<compile_context>
chip_gen: v6e
topology: v6e:2x2x1
jax: 0.10.0
libtpu: 0.0.40
codegen_flags: <defaults>
</compile_context>

<pallas_src>
import functools

import jax
import jax.numpy as jnp
import numpy as np
from jax.experimental import pallas as pl
from jax.experimental.pallas import tpu as pltpu

_COMPUTE_DTYPE = jnp.bfloat16  # MXU operand dtype (accumulation stays f32)


def _build_tap_masks(K, D, H, W):
    """0/1 validity mask per conv tap (SAME zero padding), flat over D*H*W.

    Static function of the shape only -> computed once on the host and passed
    to the kernel as a resident (K^3, D*H*W) f32 input.
    """
    p = K // 2
    d = np.arange(D)[:, None, None]
    h = np.arange(H)[None, :, None]
    w = np.arange(W)[None, None, :]
    rows = []
    for kd in range(K):
        for kh in range(K):
            for kw in range(K):
                dd, dh, dw = kd - p, kh - p, kw - p
                valid = ((d + dd >= 0) & (d + dd < D) &
                         (h + dh >= 0) & (h + dh < H) &
                         (w + dw >= 0) & (w + dw < W))
                rows.append(valid.reshape(-1))
    return np.stack(rows).astype(np.float32)  # (K^3, D*H*W)


def _make_fused_resblock_kernel(K, C, D, H, W, res_scale):
    """Fused ResBlock kernel for one batch element, channels-first flat layout."""
    p = K // 2
    S = D * H * W
    taps = [(kd, kh, kw) for kd in range(K) for kh in range(K) for kw in range(K)]

    def kernel(mask_ref, x_ref, w1_ref, b1_ref, w2_ref, b2_ref, out_ref,
               slab_ref):
        # mask_ref      : (K^3, S) f32  0/1 tap-validity masks (hoisted, resident)
        # x_ref/out_ref : (1, C, S)     lane-dense HBM blocks (f32)
        # w*_ref        : (C, K^3*C)    bf16 im2col-ordered weights
        # b*_ref        : (C, 1)        f32
        # slab_ref      : (K^3*C, S)    bf16 VMEM scratch -- im2col slab

        def build_slab(act):
            # act: (C, S) f32 value.  Every tap is an aligned static lane
            # rotation of the whole flat volume; positions that would wrap
            # around (or cross a row/plane boundary) are exactly the masked
            # ones, so the 0/1 mask reproduces SAME zero padding.
            for t, (kd, kh, kw) in enumerate(taps):
                dd, dh, dw = kd - p, kh - p, kw - p
                delta = dd * H * W + dh * W + dw
                tap = act if delta == 0 else pltpu.roll(act, (-delta) % S, axis=1)
                if (dd, dh, dw) != (0, 0, 0):
                    tap = tap * mask_ref[t:t + 1, :]
                slab_ref[t * C:(t + 1) * C, :] = tap.astype(slab_ref.dtype)

        def conv(w_ref, b_ref):
            # One MXU contraction over all taps*Cin; bf16 operands, f32 acc.
            acc = jnp.dot(w_ref[...], slab_ref[...],
                          preferred_element_type=jnp.float32)      # (C, S) f32
            return acc + b_ref[...]                                 # + bias

        x = x_ref[0]                                                # (C, S) f32

        # ---- conv1 + ReLU ---------------------------------------------------
        build_slab(x)
        h = jnp.maximum(conv(w1_ref, b1_ref), 0.0)

        # ---- conv2 ------------------------------------------------------------
        # TODO(synk): at production n_feats (C >= 64), benchmark dropping the
        # materialized slab in favor of K^3 per-tap accumulating matmuls.
        build_slab(h)
        y = conv(w2_ref, b2_ref)

        # ---- res_scale * body(x) + x, lane-dense store ------------------------
        out_ref[0] = (y * res_scale + x).astype(out_ref.dtype)

    return kernel


def _resblock_pallas(x_flat, mask, w1, b1, w2, b2, *, K, C, D, H, W, res_scale):
    N = x_flat.shape[0]
    S = D * H * W
    R = K * K * K * C

    kernel = _make_fused_resblock_kernel(K, C, D, H, W, float(res_scale))

    # TODO(synk): for large volumes add a spatial (D) "parallel" grid axis with
    # halo recompute so each v7x TensorCore gets >1 grid step and the bf16 slab
    # (27*C*S_tile*2 B) stays within v7x's 64 MiB VMEM; optionally fold small
    # batches into the matmul lane dimension to widen the MXU lane extent.
    return pl.pallas_call(
        kernel,
        out_shape=jax.ShapeDtypeStruct((N, C, S), x_flat.dtype),
        grid=(N,),
        in_specs=[
            pl.BlockSpec((K * K * K, S), lambda n: (0, 0)),  # tap masks (resident)
            pl.BlockSpec((1, C, S), lambda n: (n, 0, 0)),    # x (lane-dense)
            pl.BlockSpec((C, R), lambda n: (0, 0)),          # w1 (bf16)
            pl.BlockSpec((C, 1), lambda n: (0, 0)),          # b1
            pl.BlockSpec((C, R), lambda n: (0, 0)),          # w2 (bf16)
            pl.BlockSpec((C, 1), lambda n: (0, 0)),          # b2
        ],
        out_specs=pl.BlockSpec((1, C, S), lambda n: (n, 0, 0)),
        scratch_shapes=[
            pltpu.VMEM((R, S), _COMPUTE_DTYPE),              # bf16 im2col slab
        ],
        compiler_params=pltpu.CompilerParams(
            dimension_semantics=("parallel",),
            vmem_limit_bytes=16 * 1024 * 1024,  # actual usage here ~0.2 MiB
        ),
    )(mask, x_flat, w1, b1, w2, b2)


@functools.partial(jax.jit, static_argnames=("res_scale",))
def resblock_forward(x_ncdhw, params, res_scale=1.0):
    """ResBlock forward. x_ncdhw: (N, C, D, H, W), like the PyTorch module."""
    N, C, D, H, W = x_ncdhw.shape
    K = params["w1"].shape[0]
    S = D * H * W
    R = K * K * K * C

    # Free reshape (row-major NCDHW == (N, C, D*H*W)); no HBM transpose.
    x_flat = x_ncdhw.reshape(N, C, S)

    # Host-built (trace-time constant) 0/1 tap validity masks.
    mask = jnp.asarray(_build_tap_masks(K, D, H, W))

    # Weights (K,K,K,Cin,Cout) -> (Cout, K^3*Cin) im2col order; bf16 MXU operands.
    w1 = jnp.transpose(params["w1"].reshape(R, C)).astype(_COMPUTE_DTYPE)
    w2 = jnp.transpose(params["w2"].reshape(R, C)).astype(_COMPUTE_DTYPE)
    b1 = params["b1"].reshape(C, 1).astype(jnp.float32)
    b2 = params["b2"].reshape(C, 1).astype(jnp.float32)

    out = _resblock_pallas(x_flat, mask, w1, b1, w2, b2, K=K, C=C, D=D, H=H,
                           W=W, res_scale=float(res_scale))
    return out.reshape(N, C, D, H, W)


def init_resblock_params(key, n_feats, kernel_size):
    """Deterministic synthetic params. Weights stored as (K,K,K,Cin,Cout)."""
    k1, k2, k3, k4 = jax.random.split(key, 4)
    fan_in = n_feats * kernel_size ** 3
    scale = 1.0 / np.sqrt(fan_in)
    shape_w = (kernel_size, kernel_size, kernel_size, n_feats, n_feats)
    return {
        "w1": jax.random.uniform(k1, shape_w, jnp.float32, -scale, scale),
        "b1": jax.random.uniform(k2, (n_feats,), jnp.float32, -scale, scale),
        "w2": jax.random.uniform(k3, shape_w, jnp.float32, -scale, scale),
        "b2": jax.random.uniform(k4, (n_feats,), jnp.float32, -scale, scale),
    }


def _reference_resblock(x_ncdhw, params, res_scale=1.0):
    """Pure-JAX reference (lax conv) used only to validate the Pallas kernel."""
    x = jnp.transpose(x_ncdhw, (0, 2, 3, 4, 1))
    dn = jax.lax.conv_dimension_numbers(x.shape, params["w1"].shape,
                                        ("NDHWC", "DHWIO", "NDHWC"))
    c1 = jax.lax.conv_general_dilated(x, params["w1"], (1, 1, 1), "SAME",
                                      dimension_numbers=dn) + params["b1"]
    c1 = jnp.maximum(c1, 0.0)
    c2 = jax.lax.conv_general_dilated(c1, params["w2"], (1, 1, 1), "SAME",
                                      dimension_numbers=dn) + params["b2"]
    y = c2 * res_scale + x
    return jnp.transpose(y, (0, 4, 1, 2, 3))


if __name__ == "__main__":
    key = jax.random.PRNGKey(0)
    k_x, k_p = jax.random.split(key)

    # Small shapes consistent with the module: Conv3d -> 5D input (N, C, D, H, W)
    N, C, D, H, W = 2, 8, 4, 8, 8
    kernel_size = 3
    res_scale = 0.1  # exercise the res_scale path (EDSR-style)

    x = jax.random.normal(k_x, (N, C, D, H, W), jnp.float32)
    params = init_resblock_params(k_p, n_feats=C, kernel_size=kernel_size)

    out = jax.block_until_ready(resblock_forward(x, params, res_scale=res_scale))

    ref = jax.block_until_ready(_reference_resblock(x, params, res_scale))
    # bf16 MXU operands (f32 accumulation) vs. the f32 lax reference.
    np.testing.assert_allclose(np.asarray(out), np.asarray(ref),
                               rtol=2e-2, atol=2e-2)

    print("KERNEL_OK")
</pallas_src>

<mosaic_0001>
module attributes {stable_mosaic.version = 11 : i64} {
  func.func @kernel(%arg0: i32, %arg1: memref<27x256xf32, #tpu.memory_space<vmem>>, %arg2: memref<1x8x256xf32, #tpu.memory_space<vmem>>, %arg3: memref<8x216xbf16, #tpu.memory_space<vmem>>, %arg4: memref<8x1xf32, #tpu.memory_space<vmem>>, %arg5: memref<8x216xbf16, #tpu.memory_space<vmem>>, %arg6: memref<8x1xf32, #tpu.memory_space<vmem>>, %arg7: memref<1x8x256xf32, #tpu.memory_space<vmem>>, %arg8: memref<216x256xbf16, #tpu.memory_space<vmem>>) attributes {dimension_semantics = [#tpu.dimension_semantics<parallel>], iteration_bounds = array<i64: 2>, scalar_prefetch = 0 : i64, scratch_operands = 1 : i64, tpu.core_type = #tpu.core_type<tc>, window_params = [{pipeline_mode = #tpu.pipeline_mode<synchronous>, transform_indices = @transform_0, window_bounds = array<i64: 27, 256>}, {transform_indices = @transform_1, window_bounds = array<i64: 1, 8, 256>}, {pipeline_mode = #tpu.pipeline_mode<synchronous>, transform_indices = @transform_2, window_bounds = array<i64: 8, 216>}, {pipeline_mode = #tpu.pipeline_mode<synchronous>, transform_indices = @transform_3, window_bounds = array<i64: 8, 1>}, {pipeline_mode = #tpu.pipeline_mode<synchronous>, transform_indices = @transform_4, window_bounds = array<i64: 8, 216>}, {pipeline_mode = #tpu.pipeline_mode<synchronous>, transform_indices = @transform_5, window_bounds = array<i64: 8, 1>}, {transform_indices = @transform_6, window_bounds = array<i64: 1, 8, 256>}]} {
    %c0 = arith.constant 0 : index
    %c0_0 = arith.constant 0 : index
    %c0_1 = arith.constant 0 : index
    %0 = vector.load %arg2[%c0, %c0_0, %c0_1] : memref<1x8x256xf32, #tpu.memory_space<vmem>>, vector<1x8x256xf32>
    %1 = vector.shape_cast %0 : vector<1x8x256xf32> to vector<8x256xf32>
    %c73_i32 = arith.constant 73 : i32
    %2 = tpu.dynamic_rotate %1 by %c73_i32 dim 1 : vector<8x256xf32>, i32 -> vector<8x256xf32>
    %c0_2 = arith.constant 0 : index
    %c0_3 = arith.constant 0 : index
    %3 = vector.load %arg1[%c0_2, %c0_3] : memref<27x256xf32, #tpu.memory_space<vmem>>, vector<1x256xf32>
    %4 = vector.broadcast %3 : vector<1x256xf32> to vector<8x256xf32>
    %5 = arith.mulf %2, %4 : vector<8x256xf32>
    %6 = arith.truncf %5 : vector<8x256xf32> to vector<8x256xbf16>
    %c0_4 = arith.constant 0 : index
    %c0_5 = arith.constant 0 : index
    %7 = vector.load %arg8[%c0_4, %c0_5] : memref<216x256xbf16, #tpu.memory_space<vmem>>, vector<8x256xbf16>
    tpu.vector_store %arg8[%c0_4, %c0_5], %6 {strides = array<i32>} : memref<216x256xbf16, #tpu.memory_space<vmem>>, vector<8x256xbf16>,
    %c72_i32 = arith.constant 72 : i32
    %8 = tpu.dynamic_rotate %1 by %c72_i32 dim 1 : vector<8x256xf32>, i32 -> vector<8x256xf32>
    %c1 = arith.constant 1 : index
    %c0_6 = arith.constant 0 : index
    %9 = vector.load %arg1[%c1, %c0_6] : memref<27x256xf32, #tpu.memory_space<vmem>>, vector<1x256xf32>
    %10 = vector.broadcast %9 : vector<1x256xf32> to vector<8x256xf32>
    %11 = arith.mulf %8, %10 : vector<8x256xf32>
    %12 = arith.truncf %11 : vector<8x256xf32> to vector<8x256xbf16>
    %c8 = arith.constant 8 : index
    %c0_7 = arith.constant 0 : index
    %13 = vector.load %arg8[%c8, %c0_7] : memref<216x256xbf16, #tpu.memory_space<vmem>>, vector<8x256xbf16>
    tpu.vector_store %arg8[%c8, %c0_7], %12 {strides = array<i32>} : memref<216x256xbf16, #tpu.memory_space<vmem>>, vector<8x256xbf16>,
    %c71_i32 = arith.constant 71 : i32
    %14 = tpu.dynamic_rotate %1 by %c71_i32 dim 1 : vector<8x256xf32>, i32 -> vector<8x256xf32>
    %c2 = arith.constant 2 : index
    %c0_8 = arith.constant 0 : index
    %15 = vector.load %arg1[%c2, %c0_8] : memref<27x256xf32, #tpu.memory_space<vmem>>, vector<1x256xf32>
    %16 = vector.broadcast %15 : vector<1x256xf32> to vector<8x256xf32>
    %17 = arith.mulf %14, %16 : vector<8x256xf32>
    %18 = arith.truncf %17 : vector<8x256xf32> to vector<8x256xbf16>
    %c16 = arith.constant 16 : index
    %c0_9 = arith.constant 0 : index
    %19 = vector.load %arg8[%c16, %c0_9] : memref<216x256xbf16, #tpu.memory_space<vmem>>, vector<8x256xbf16>
    tpu.vector_store %arg8[%c16, %c0_9], %18 {strides = array<i32>} : memref<216x256xbf16, #tpu.memory_space<vmem>>, vector<8x256xbf16>,
    %c65_i32 = arith.constant 65 : i32
    %20 = tpu.dynamic_rotate %1 by %c65_i32 dim 1 : vector<8x256xf32>, i32 -> vector<8x256xf32>
    %c3 = arith.constant 3 : index
    %c0_10 = arith.constant 0 : index
    %21 = vector.load %arg1[%c3, %c0_10] : memref<27x256xf32, #tpu.memory_space<vmem>>, vector<1x256xf32>
    %22 = vector.broadcast %21 : vector<1x256xf32> to vector<8x256xf32>
    %23 = arith.mulf %20, %22 : vector<8x256xf32>
    %24 = arith.truncf %23 : vector<8x256xf32> to vector<8x256xbf16>
    %c24 = arith.constant 24 : index
    %c0_11 = arith.constant 0 : index
    %25 = vector.load %arg8[%c24, %c0_11] : memref<216x256xbf16, #tpu.memory_space<vmem>>, vector<8x256xbf16>
    tpu.vector_store %arg8[%c24, %c0_11], %24 {strides = array<i32>} : memref<216x256xbf16, #tpu.memory_space<vmem>>, vector<8x256xbf16>,
    %c64_i32 = arith.constant 64 : i32
    %26 = tpu.dynamic_rotate %1 by %c64_i32 dim 1 : vector<8x256xf32>, i32 -> vector<8x256xf32>
    %c4 = arith.constant 4 : index
    %c0_12 = arith.constant 0 : index
    %27 = vector.load %arg1[%c4, %c0_12] : memref<27x256xf32, #tpu.memory_space<vmem>>, vector<1x256xf32>
    %28 = vector.broadcast %27 : vector<1x256xf32> to vector<8x256xf32>
    %29 = arith.mulf %26, %28 : vector<8x256xf32>
    %30 = arith.truncf %29 : vector<8x256xf32> to vector<8x256xbf16>
    %c32 = arith.constant 32 : index
    %c0_13 = arith.constant 0 : index
    %31 = vector.load %arg8[%c32, %c0_13] : memref<216x256xbf16, #tpu.memory_space<vmem>>, vector<8x256xbf16>
    tpu.vector_store %arg8[%c32, %c0_13], %30 {strides = array<i32>} : memref<216x256xbf16, #tpu.memory_space<vmem>>, vector<8x256xbf16>,
    %c63_i32 = arith.constant 63 : i32
    %32 = tpu.dynamic_rotate %1 by %c63_i32 dim 1 : vector<8x256xf32>, i32 -> vector<8x256xf32>
    %c5 = arith.constant 5 : index
    %c0_14 = arith.constant 0 : index
    %33 = vector.load %arg1[%c5, %c0_14] : memref<27x256xf32, #tpu.memory_space<vmem>>, vector<1x256xf32>
    %34 = vector.broadcast %33 : vector<1x256xf32> to vector<8x256xf32>
    %35 = arith.mulf %32, %34 : vector<8x256xf32>
    %36 = arith.truncf %35 : vector<8x256xf32> to vector<8x256xbf16>
    %c40 = arith.constant 40 : index
    %c0_15 = arith.constant 0 : index
    %37 = vector.load %arg8[%c40, %c0_15] : memref<216x256xbf16, #tpu.memory_space<vmem>>, vector<8x256xbf16>
    tpu.vector_store %arg8[%c40, %c0_15], %36 {strides = array<i32>} : memref<216x256xbf16, #tpu.memory_space<vmem>>, vector<8x256xbf16>,
    %c57_i32 = arith.constant 57 : i32
    %38 = tpu.dynamic_rotate %1 by %c57_i32 dim 1 : vector<8x256xf32>, i32 -> vector<8x256xf32>
    %c6 = arith.constant 6 : index
    %c0_16 = arith.constant 0 : index
    %39 = vector.load %arg1[%c6, %c0_16] : memref<27x256xf32, #tpu.memory_space<vmem>>, vector<1x256xf32>
    %40 = vector.broadcast %39 : vector<1x256xf32> to vector<8x256xf32>
    %41 = arith.mulf %38, %40 : vector<8x256xf32>
    %42 = arith.truncf %41 : vector<8x256xf32> to vector<8x256xbf16>
    %c48 = arith.constant 48 : index
    %c0_17 = arith.constant 0 : index
    %43 = vector.load %arg8[%c48, %c0_17] : memref<216x256xbf16, #tpu.memory_space<vmem>>, vector<8x256xbf16>
    tpu.vector_store %arg8[%c48, %c0_17], %42 {strides = array<i32>} : memref<216x256xbf16, #tpu.memory_space<vmem>>, vector<8x256xbf16>,
    %c56_i32 = arith.constant 56 : i32
    %44 = tpu.dynamic_rotate %1 by %c56_i32 dim 1 : vector<8x256xf32>, i32 -> vector<8x256xf32>
    %c7 = arith.constant 7 : index
    %c0_18 = arith.constant 0 : index
    %45 = vector.load %arg1[%c7, %c0_18] : memref<27x256xf32, #tpu.memory_space<vmem>>, vector<1x256xf32>
    %46 = vector.broadcast %45 : vector<1x256xf32> to vector<8x256xf32>
    %47 = arith.mulf %44, %46 : vector<8x256xf32>
    %48 = arith.truncf %47 : vector<8x256xf32> to vector<8x256xbf16>
    %c56 = arith.constant 56 : index
    %c0_19 = arith.constant 0 : index
    %49 = vector.load %arg8[%c56, %c0_19] : memref<216x256xbf16, #tpu.memory_space<vmem>>, vector<8x256xbf16>
    tpu.vector_store %arg8[%c56, %c0_19], %48 {strides = array<i32>} : memref<216x256xbf16, #tpu.memory_space<vmem>>, vector<8x256xbf16>,
    %c55_i32 = arith.constant 55 : i32
    %50 = tpu.dynamic_rotate %1 by %c55_i32 dim 1 : vector<8x256xf32>, i32 -> vector<8x256xf32>
    %c8_20 = arith.constant 8 : index
    %c0_21 = arith.constant 0 : index
    %51 = vector.load %arg1[%c8_20, %c0_21] : memref<27x256xf32, #tpu.memory_space<vmem>>, vector<1x256xf32>
    %52 = vector.broadcast %51 : vector<1x256xf32> to vector<8x256xf32>
    %53 = arith.mulf %50, %52 : vector<8x256xf32>
    %54 = arith.truncf %53 : vector<8x256xf32> to vector<8x256xbf16>
    %c64 = arith.constant 64 : index
    %c0_22 = arith.constant 0 : index
    %55 = vector.load %arg8[%c64, %c0_22] : memref<216x256xbf16, #tpu.memory_space<vmem>>, vector<8x256xbf16>
    tpu.vector_store %arg8[%c64, %c0_22], %54 {strides = array<i32>} : memref<216x256xbf16, #tpu.memory_space<vmem>>, vector<8x256xbf16>,
    %c9_i32 = arith.constant 9 : i32
    %56 = tpu.dynamic_rotate %1 by %c9_i32 dim 1 : vector<8x256xf32>, i32 -> vector<8x256xf32>
    %c9 = arith.constant 9 : index
    %c0_23 = arith.constant 0 : index
    %57 = vector.load %arg1[%c9, %c0_23] : memref<27x256xf32, #tpu.memory_space<vmem>>, vector<1x256xf32>
    %58 = vector.broadcast %57 : vector<1x256xf32> to vector<8x256xf32>
    %59 = arith.mulf %56, %58 : vector<8x256xf32>
    %60 = arith.truncf %59 : vector<8x256xf32> to vector<8x256xbf16>
    %c72 = arith.constant 72 : index
    %c0_24 = arith.constant 0 : index
    %61 = vector.load %arg8[%c72, %c0_24] : memref<216x256xbf16, #tpu.memory_space<vmem>>, vector<8x256xbf16>
    tpu.vector_store %arg8[%c72, %c0_24], %60 {strides = array<i32>} : memref<216x256xbf16, #tpu.memory_space<vmem>>, vector<8x256xbf16>,
    %c8_i32 = arith.constant 8 : i32
    %62 = tpu.dynamic_rotate %1 by %c8_i32 dim 1 : vector<8x256xf32>, i32 -> vector<8x256xf32>
    %c10 = arith.constant 10 : index
    %c0_25 = arith.constant 0 : index
    %63 = vector.load %arg1[%c10, %c0_25] : memref<27x256xf32, #tpu.memory_space<vmem>>, vector<1x256xf32>
    %64 = vector.broadcast %63 : vector<1x256xf32> to vector<8x256xf32>
    %65 = arith.mulf %62, %64 : vector<8x256xf32>
    %66 = arith.truncf %65 : vector<8x256xf32> to vector<8x256xbf16>
    %c80 = arith.constant 80 : index
    %c0_26 = arith.constant 0 : index
    %67 = vector.load %arg8[%c80, %c0_26] : memref<216x256xbf16, #tpu.memory_space<vmem>>, vector<8x256xbf16>
    tpu.vector_store %arg8[%c80, %c0_26], %66 {strides = array<i32>} : memref<216x256xbf16, #tpu.memory_space<vmem>>, vector<8x256xbf16>,
    %c7_i32 = arith.constant 7 : i32
    %68 = tpu.dynamic_rotate %1 by %c7_i32 dim 1 : vector<8x256xf32>, i32 -> vector<8x256xf32>
    %c11 = arith.constant 11 : index
    %c0_27 = arith.constant 0 : index
    %69 = vector.load %arg1[%c11, %c0_27] : memref<27x256xf32, #tpu.memory_space<vmem>>, vector<1x256xf32>
    %70 = vector.broadcast %69 : vector<1x256xf32> to vector<8x256xf32>
    %71 = arith.mulf %68, %70 : vector<8x256xf32>
    %72 = arith.truncf %71 : vector<8x256xf32> to vector<8x256xbf16>
    %c88 = arith.constant 88 : index
    %c0_28 = arith.constant 0 : index
    %73 = vector.load %arg8[%c88, %c0_28] : memref<216x256xbf16, #tpu.memory_space<vmem>>, vector<8x256xbf16>
    tpu.vector_store %arg8[%c88, %c0_28], %72 {strides = array<i32>} : memref<216x256xbf16, #tpu.memory_space<vmem>>, vector<8x256xbf16>,
    %c1_i32 = arith.constant 1 : i32
    %74 = tpu.dynamic_rotate %1 by %c1_i32 dim 1 : vector<8x256xf32>, i32 -> vector<8x256xf32>
    %c12 = arith.constant 12 : index
    %c0_29 = arith.constant 0 : index
    %75 = vector.load %arg1[%c12, %c0_29] : memref<27x256xf32, #tpu.memory_space<vmem>>, vector<1x256xf32>
    %76 = vector.broadcast %75 : vector<1x256xf32> to vector<8x256xf32>
    %77 = arith.mulf %74, %76 : vector<8x256xf32>
    %78 = arith.truncf %77 : vector<8x256xf32> to vector<8x256xbf16>
    %c96 = arith.constant 96 : index
    %c0_30 = arith.constant 0 : index
    %79 = vector.load %arg8[%c96, %c0_30] : memref<216x256xbf16, #tpu.memory_space<vmem>>, vector<8x256xbf16>
    tpu.vector_store %arg8[%c96, %c0_30], %78 {strides = array<i32>} : memref<216x256xbf16, #tpu.memory_space<vmem>>, vector<8x256xbf16>,
    %80 = arith.truncf %1 : vector<8x256xf32> to vector<8x256xbf16>
    %c104 = arith.constant 104 : index
    %c0_31 = arith.constant 0 : index
    %81 = vector.load %arg8[%c104, %c0_31] : memref<216x256xbf16, #tpu.memory_space<vmem>>, vector<8x256xbf16>
    tpu.vector_store %arg8[%c104, %c0_31], %80 {strides = array<i32>} : memref<216x256xbf16, #tpu.memory_space<vmem>>, vector<8x256xbf16>,
    %c255_i32 = arith.constant 255 : i32
    %82 = tpu.dynamic_rotate %1 by %c255_i32 dim 1 : vector<8x256xf32>, i32 -> vector<8x256xf32>
    %c14 = arith.constant 14 : index
    %c0_32 = arith.constant 0 : index
    %83 = vector.load %arg1[%c14, %c0_32] : memref<27x256xf32, #tpu.memory_space<vmem>>, vector<1x256xf32>
    %84 = vector.broadcast %83 : vector<1x256xf32> to vector<8x256xf32>
    %85 = arith.mulf %82, %84 : vector<8x256xf32>
    %86 = arith.truncf %85 : vector<8x256xf32> to vector<8x256xbf16>
    %c112 = arith.constant 112 : index
    %c0_33 = arith.constant 0 : index
    %87 = vector.load %arg8[%c112, %c0_33] : memref<216x256xbf16, #tpu.memory_space<vmem>>, vector<8x256xbf16>
    tpu.vector_store %arg8[%c112, %c0_33], %86 {strides = array<i32>} : memref<216x256xbf16, #tpu.memory_space<vmem>>, vector<8x256xbf16>,
    %c249_i32 = arith.constant 249 : i32
    %88 = tpu.dynamic_rotate %1 by %c249_i32 dim 1 : vector<8x256xf32>, i32 -> vector<8x256xf32>
    %c15 = arith.constant 15 : index
    %c0_34 = arith.constant 0 : index
    %89 = vector.load %arg1[%c15, %c0_34] : memref<27x256xf32, #tpu.memory_space<vmem>>, vector<1x256xf32>
    %90 = vector.broadcast %89 : vector<1x256xf32> to vector<8x256xf32>
    %91 = arith.mulf %88, %90 : vector<8x256xf32>
    %92 = arith.truncf %91 : vector<8x256xf32> to vector<8x256xbf16>
    %c120 = arith.constant 120 : index
    %c0_35 = arith.constant 0 : index
    %93 = vector.load %arg8[%c120, %c0_35] : memref<216x256xbf16, #tpu.memory_space<vmem>>, vector<8x256xbf16>
    tpu.vector_store %arg8[%c120, %c0_35], %92 {strides = array<i32>} : memref<216x256xbf16, #tpu.memory_space<vmem>>, vector<8x256xbf16>,
    %c248_i32 = arith.constant 248 : i32
    %94 = tpu.dynamic_rotate %1 by %c248_i32 dim 1 : vector<8x256xf32>, i32 -> vector<8x256xf32>
    %c16_36 = arith.constant 16 : index
    %c0_37 = arith.constant 0 : index
    %95 = vector.load %arg1[%c16_36, %c0_37] : memref<27x256xf32, #tpu.memory_space<vmem>>, vector<1x256xf32>
    %96 = vector.broadcast %95 : vector<1x256xf32> to vector<8x256xf32>
    %97 = arith.mulf %94, %96 : vector<8x256xf32>
    %98 = arith.truncf %97 : vector<8x256xf32> to vector<8x256xbf16>
    %c128 = arith.constant 128 : index
    %c0_38 = arith.constant 0 : index
    %99 = vector.load %arg8[%c128, %c0_38] : memref<216x256xbf16, #tpu.memory_space<vmem>>, vector<8x256xbf16>
    tpu.vector_store %arg8[%c128, %c0_38], %98 {strides = array<i32>} : memref<216x256xbf16, #tpu.memory_space<vmem>>, vector<8x256xbf16>,
    %c247_i32 = arith.constant 247 : i32
    %100 = tpu.dynamic_rotate %1 by %c247_i32 dim 1 : vector<8x256xf32>, i32 -> vector<8x256xf32>
    %c17 = arith.constant 17 : index
    %c0_39 = arith.constant 0 : index
    %101 = vector.load %arg1[%c17, %c0_39] : memref<27x256xf32, #tpu.memory_space<vmem>>, vector<1x256xf32>
    %102 = vector.broadcast %101 : vector<1x256xf32> to vector<8x256xf32>
    %103 = arith.mulf %100, %102 : vector<8x256xf32>
    %104 = arith.truncf %103 : vector<8x256xf32> to vector<8x256xbf16>
    %c136 = arith.constant 136 : index
    %c0_40 = arith.constant 0 : index
    %105 = vector.load %arg8[%c136, %c0_40] : memref<216x256xbf16, #tpu.memory_space<vmem>>, vector<8x256xbf16>
    tpu.vector_store %arg8[%c136, %c0_40], %104 {strides = array<i32>} : memref<216x256xbf16, #tpu.memory_space<vmem>>, vector<8x256xbf16>,
    %c201_i32 = arith.constant 201 : i32
    %106 = tpu.dynamic_rotate %1 by %c201_i32 dim 1 : vector<8x256xf32>, i32 -> vector<8x256xf32>
    %c18 = arith.constant 18 : index
    %c0_41 = arith.constant 0 : index
    %107 = vector.load %arg1[%c18, %c0_41] : memref<27x256xf32, #tpu.memory_space<vmem>>, vector<1x256xf32>
    %108 = vector.broadcast %107 : vector<1x256xf32> to vector<8x256xf32>
    %109 = arith.mulf %106, %108 : vector<8x256xf32>
    %110 = arith.truncf %109 : vector<8x256xf32> to vector<8x256xbf16>
    %c144 = arith.constant 144 : index
    %c0_42 = arith.constant 0 : index
    %111 = vector.load %arg8[%c144, %c0_42] : memref<216x256xbf16, #tpu.memory_space<vmem>>, vector<8x256xbf16>
    tpu.vector_store %arg8[%c144, %c0_42], %110 {strides = array<i32>} : memref<216x256xbf16, #tpu.memory_space<vmem>>, vector<8x256xbf16>,
    %c200_i32 = arith.constant 200 : i32
    %112 = tpu.dynamic_rotate %1 by %c200_i32 dim 1 : vector<8x256xf32>, i32 -> vector<8x256xf32>
    %c19 = arith.constant 19 : index
    %c0_43 = arith.constant 0 : index
    %113 = vector.load %arg1[%c19, %c0_43] : memref<27x256xf32, #tpu.memory_space<vmem>>, vector<1x256xf32>
    %114 = vector.broadcast %113 : vector<1x256xf32> to vector<8x256xf32>
    %115 = arith.mulf %112, %114 : vector<8x256xf32>
    %116 = arith.truncf %115 : vector<8x256xf32> to vector<8x256xbf16>
    %c152 = arith.constant 152 : index
    %c0_44 = arith.constant 0 : index
    %117 = vector.load %arg8[%c152, %c0_44] : memref<216x256xbf16, #tpu.memory_space<vmem>>, vector<8x256xbf16>
    tpu.vector_store %arg8[%c152, %c0_44], %116 {strides = array<i32>} : memref<216x256xbf16, #tpu.memory_space<vmem>>, vector<8x256xbf16>,
    %c199_i32 = arith.constant 199 : i32
    %118 = tpu.dynamic_rotate %1 by %c199_i32 dim 1 : vector<8x256xf32>, i32 -> vector<8x256xf32>
    %c20 = arith.constant 20 : index
    %c0_45 = arith.constant 0 : index
    %119 = vector.load %arg1[%c20, %c0_45] : memref<27x256xf32, #tpu.memory_space<vmem>>, vector<1x256xf32>
    %120 = vector.broadcast %119 : vector<1x256xf32> to vector<8x256xf32>
    %121 = arith.mulf %118, %120 : vector<8x256xf32>
    %122 = arith.truncf %121 : vector<8x256xf32> to vector<8x256xbf16>
    %c160 = arith.constant 160 : index
    %c0_46 = arith.constant 0 : index
    %123 = vector.load %arg8[%c160, %c0_46] : memref<216x256xbf16, #tpu.memory_space<vmem>>, vector<8x256xbf16>
    tpu.vector_store %arg8[%c160, %c0_46], %122 {strides = array<i32>} : memref<216x256xbf16, #tpu.memory_space<vmem>>, vector<8x256xbf16>,
    %c193_i32 = arith.constant 193 : i32
    %124 = tpu.dynamic_rotate %1 by %c193_i32 dim 1 : vector<8x256xf32>, i32 -> vector<8x256xf32>
    %c21 = arith.constant 21 : index
    %c0_47 = arith.constant 0 : index
    %125 = vector.load %arg1[%c21, %c0_47] : memref<27x256xf32, #tpu.memory_space<vmem>>, vector<1x256xf32>
    %126 = vector.broadcast %125 : vector<1x256xf32> to vector<8x256xf32>
    %127 = arith.mulf %124, %126 : vector<8x256xf32>
    %128 = arith.truncf %127 : vector<8x256xf32> to vector<8x256xbf16>
    %c168 = arith.constant 168 : index
    %c0_48 = arith.constant 0 : index
    %129 = vector.load %arg8[%c168, %c0_48] : memref<216x256xbf16, #tpu.memory_space<vmem>>, vector<8x256xbf16>
    tpu.vector_store %arg8[%c168, %c0_48], %128 {strides = array<i32>} : memref<216x256xbf16, #tpu.memory_space<vmem>>, vector<8x256xbf16>,
    %c192_i32 = arith.constant 192 : i32
    %130 = tpu.dynamic_rotate %1 by %c192_i32 dim 1 : vector<8x256xf32>, i32 -> vector<8x256xf32>
    %c22 = arith.constant 22 : index
    %c0_49 = arith.constant 0 : index
    %131 = vector.load %arg1[%c22, %c0_49] : memref<27x256xf32, #tpu.memory_space<vmem>>, vector<1x256xf32>
    %132 = vector.broadcast %131 : vector<1x256xf32> to vector<8x256xf32>
    %133 = arith.mulf %130, %132 : vector<8x256xf32>
    %134 = arith.truncf %133 : vector<8x256xf32> to vector<8x256xbf16>
    %c176 = arith.constant 176 : index
    %c0_50 = arith.constant 0 : index
    %135 = vector.load %arg8[%c176, %c0_50] : memref<216x256xbf16, #tpu.memory_space<vmem>>, vector<8x256xbf16>
    tpu.vector_store %arg8[%c176, %c0_50], %134 {strides = array<i32>} : memref<216x256xbf16, #tpu.memory_space<vmem>>, vector<8x256xbf16>,
    %c191_i32 = arith.constant 191 : i32
    %136 = tpu.dynamic_rotate %1 by %c191_i32 dim 1 : vector<8x256xf32>, i32 -> vector<8x256xf32>
    %c23 = arith.constant 23 : index
    %c0_51 = arith.constant 0 : index
    %137 = vector.load %arg1[%c23, %c0_51] : memref<27x256xf32, #tpu.memory_space<vmem>>, vector<1x256xf32>
    %138 = vector.broadcast %137 : vector<1x256xf32> to vector<8x256xf32>
    %139 = arith.mulf %136, %138 : vector<8x256xf32>
    %140 = arith.truncf %139 : vector<8x256xf32> to vector<8x256xbf16>
    %c184 = arith.constant 184 : index
    %c0_52 = arith.constant 0 : index
    %141 = vector.load %arg8[%c184, %c0_52] : memref<216x256xbf16, #tpu.memory_space<vmem>>, vector<8x256xbf16>
    tpu.vector_store %arg8[%c184, %c0_52], %140 {strides = array<i32>} : memref<216x256xbf16, #tpu.memory_space<vmem>>, vector<8x256xbf16>,
    %c185_i32 = arith.constant 185 : i32
    %142 = tpu.dynamic_rotate %1 by %c185_i32 dim 1 : vector<8x256xf32>, i32 -> vector<8x256xf32>
    %c24_53 = arith.constant 24 : index
    %c0_54 = arith.constant 0 : index
    %143 = vector.load %arg1[%c24_53, %c0_54] : memref<27x256xf32, #tpu.memory_space<vmem>>, vector<1x256xf32>
    %144 = vector.broadcast %143 : vector<1x256xf32> to vector<8x256xf32>
    %145 = arith.mulf %142, %144 : vector<8x256xf32>
    %146 = arith.truncf %145 : vector<8x256xf32> to vector<8x256xbf16>
    %c192 = arith.constant 192 : index
    %c0_55 = arith.constant 0 : index
    %147 = vector.load %arg8[%c192, %c0_55] : memref<216x256xbf16, #tpu.memory_space<vmem>>, vector<8x256xbf16>
    tpu.vector_store %arg8[%c192, %c0_55], %146 {strides = array<i32>} : memref<216x256xbf16, #tpu.memory_space<vmem>>, vector<8x256xbf16>,
    %c184_i32 = arith.constant 184 : i32
    %148 = tpu.dynamic_rotate %1 by %c184_i32 dim 1 : vector<8x256xf32>, i32 -> vector<8x256xf32>
    %c25 = arith.constant 25 : index
    %c0_56 = arith.constant 0 : index
    %149 = vector.load %arg1[%c25, %c0_56] : memref<27x256xf32, #tpu.memory_space<vmem>>, vector<1x256xf32>
    %150 = vector.broadcast %149 : vector<1x256xf32> to vector<8x256xf32>
    %151 = arith.mulf %148, %150 : vector<8x256xf32>
    %152 = arith.truncf %151 : vector<8x256xf32> to vector<8x256xbf16>
    %c200 = arith.constant 200 : index
    %c0_57 = arith.constant 0 : index
    %153 = vector.load %arg8[%c200, %c0_57] : memref<216x256xbf16, #tpu.memory_space<vmem>>, vector<8x256xbf16>
    tpu.vector_store %arg8[%c200, %c0_57], %152 {strides = array<i32>} : memref<216x256xbf16, #tpu.memory_space<vmem>>, vector<8x256xbf16>,
    %c183_i32 = arith.constant 183 : i32
    %154 = tpu.dynamic_rotate %1 by %c183_i32 dim 1 : vector<8x256xf32>, i32 -> vector<8x256xf32>
    %c26 = arith.constant 26 : index
    %c0_58 = arith.constant 0 : index
    %155 = vector.load %arg1[%c26, %c0_58] : memref<27x256xf32, #tpu.memory_space<vmem>>, vector<1x256xf32>
    %156 = vector.broadcast %155 : vector<1x256xf32> to vector<8x256xf32>
    %157 = arith.mulf %154, %156 : vector<8x256xf32>
    %158 = arith.truncf %157 : vector<8x256xf32> to vector<8x256xbf16>
    %c208 = arith.constant 208 : index
    %c0_59 = arith.constant 0 : index
    %159 = vector.load %arg8[%c208, %c0_59] : memref<216x256xbf16, #tpu.memory_space<vmem>>, vector<8x256xbf16>
    tpu.vector_store %arg8[%c208, %c0_59], %158 {strides = array<i32>} : memref<216x256xbf16, #tpu.memory_space<vmem>>, vector<8x256xbf16>,
    %c0_60 = arith.constant 0 : index
    %c0_61 = arith.constant 0 : index
    %160 = vector.load %arg3[%c0_60, %c0_61] : memref<8x216xbf16, #tpu.memory_space<vmem>>, vector<8x216xbf16>
    %c0_62 = arith.constant 0 : index
    %c0_63 = arith.constant 0 : index
    %161 = vector.load %arg8[%c0_62, %c0_63] : memref<216x256xbf16, #tpu.memory_space<vmem>>, vector<216x256xbf16>
    %cst = arith.constant dense<0.000000e+00> : vector<8x256xf32>
    %162 = tpu.matmul %160, %161, %cst {dimension_numbers = #tpu.dot_dimension_numbers<[1], [0], [0], [1], [0, 0, 1, 1], [], []>} : vector<8x216xbf16>, vector<216x256xbf16>, vector<8x256xf32> -> vector<8x256xf32>
    %c0_64 = arith.constant 0 : index
    %c0_65 = arith.constant 0 : index
    %163 = vector.load %arg4[%c0_64, %c0_65] : memref<8x1xf32, #tpu.memory_space<vmem>>, vector<8x1xf32>
    %164 = vector.broadcast %163 : vector<8x1xf32> to vector<8x256xf32>
    %165 = arith.addf %162, %164 : vector<8x256xf32>
    %cst_66 = arith.constant 0.000000e+00 : f32
    %166 = vector.broadcast %cst_66 : f32 to vector<8x256xf32>
    %167 = arith.maximumf %165, %166 : vector<8x256xf32>
    %c73_i32_67 = arith.constant 73 : i32
    %168 = tpu.dynamic_rotate %167 by %c73_i32_67 dim 1 : vector<8x256xf32>, i32 -> vector<8x256xf32>
    %c0_68 = arith.constant 0 : index
    %c0_69 = arith.constant 0 : index
    %169 = vector.load %arg1[%c0_68, %c0_69] : memref<27x256xf32, #tpu.memory_space<vmem>>, vector<1x256xf32>
    %170 = vector.broadcast %169 : vector<1x256xf32> to vector<8x256xf32>
    %171 = arith.mulf %168, %170 : vector<8x256xf32>
    %172 = arith.truncf %171 : vector<8x256xf32> to vector<8x256xbf16>
    %c0_70 = arith.constant 0 : index
    %c0_71 = arith.constant 0 : index
    %173 = vector.load %arg8[%c0_70, %c0_71] : memref<216x256xbf16, #tpu.memory_space<vmem>>, vector<8x256xbf16>
    tpu.vector_store %arg8[%c0_70, %c0_71], %172 {strides = array<i32>} : memref<216x256xbf16, #tpu.memory_space<vmem>>, vector<8x256xbf16>,
    %c72_i32_72 = arith.constant 72 : i32
    %174 = tpu.dynamic_rotate %167 by %c72_i32_72 dim 1 : vector<8x256xf32>, i32 -> vector<8x256xf32>
    %c1_73 = arith.constant 1 : index
    %c0_74 = arith.constant 0 : index
    %175 = vector.load %arg1[%c1_73, %c0_74] : memref<27x256xf32, #tpu.memory_space<vmem>>, vector<1x256xf32>
    %176 = vector.broadcast %175 : vector<1x256xf32> to vector<8x256xf32>
    %177 = arith.mulf %174, %176 : vector<8x256xf32>
    %178 = arith.truncf %177 : vector<8x256xf32> to vector<8x256xbf16>
    %c8_75 = arith.constant 8 : index
    %c0_76 = arith.constant 0 : index
    %179 = vector.load %arg8[%c8_75, %c0_76] : memref<216x256xbf16, #tpu.memory_space<vmem>>, vector<8x256xbf16>
    tpu.vector_store %arg8[%c8_75, %c0_76], %178 {strides = array<i32>} : memref<216x256xbf16, #tpu.memory_space<vmem>>, vector<8x256xbf16>,
    %c71_i32_77 = arith.constant 71 : i32
    %180 = tpu.dynamic_rotate %167 by %c71_i32_77 dim 1 : vector<8x256xf32>, i32 -> vector<8x256xf32>
    %c2_78 = arith.constant 2 : index
    %c0_79 = arith.constant 0 : index
    %181 = vector.load %arg1[%c2_78, %c0_79] : memref<27x256xf32, #tpu.memory_space<vmem>>, vector<1x256xf32>
    %182 = vector.broadcast %181 : vector<1x256xf32> to vector<8x256xf32>
    %183 = arith.mulf %180, %182 : vector<8x256xf32>
    %184 = arith.truncf %183 : vector<8x256xf32> to vector<8x256xbf16>
    %c16_80 = arith.constant 16 : index
    %c0_81 = arith.constant 0 : index
    %185 = vector.load %arg8[%c16_80, %c0_81] : memref<216x256xbf16, #tpu.memory_space<vmem>>, vector<8x256xbf16>
    tpu.vector_store %arg8[%c16_80, %c0_81], %184 {strides = array<i32>} : memref<216x256xbf16, #tpu.memory_space<vmem>>, vector<8x256xbf16>,
    %c65_i32_82 = arith.constant 65 : i32
    %186 = tpu.dynamic_rotate %167 by %c65_i32_82 dim 1 : vector<8x256xf32>, i32 -> vector<8x256xf32>
    %c3_83 = arith.constant 3 : index
    %c0_84 = arith.constant 0 : index
    %187 = vector.load %arg1[%c3_83, %c0_84] : memref<27x256xf32, #tpu.memory_space<vmem>>, vector<1x256xf32>
    %188 = vector.broadcast %187 : vector<1x256xf32> to vector<8x256xf32>
    %189 = arith.mulf %186, %188 : vector<8x256xf32>
    %190 = arith.truncf %189 : vector<8x256xf32> to vector<8x256xbf16>
    %c24_85 = arith.constant 24 : index
    %c0_86 = arith.constant 0 : index
    %191 = vector.load %arg8[%c24_85, %c0_86] : memref<216x256xbf16, #tpu.memory_space<vmem>>, vector<8x256xbf16>
    tpu.vector_store %arg8[%c24_85, %c0_86], %190 {strides = array<i32>} : memref<216x256xbf16, #tpu.memory_space<vmem>>, vector<8x256xbf16>,
    %c64_i32_87 = arith.constant 64 : i32
    %192 = tpu.dynamic_rotate %167 by %c64_i32_87 dim 1 : vector<8x256xf32>, i32 -> vector<8x256xf32>
    %c4_88 = arith.constant 4 : index
    %c0_89 = arith.constant 0 : index
    %193 = vector.load %arg1[%c4_88, %c0_89] : memref<27x256xf32, #tpu.memory_space<vmem>>, vector<1x256xf32>
    %194 = vector.broadcast %193 : vector<1x256xf32> to vector<8x256xf32>
    %195 = arith.mulf %192, %194 : vector<8x256xf32>
    %196 = arith.truncf %195 : vector<8x256xf32> to vector<8x256xbf16>
    %c32_90 = arith.constant 32 : index
    %c0_91 = arith.constant 0 : index
    %197 = vector.load %arg8[%c32_90, %c0_91] : memref<216x256xbf16, #tpu.memory_space<vmem>>, vector<8x256xbf16>
    tpu.vector_store %arg8[%c32_90, %c0_91], %196 {strides = array<i32>} : memref<216x256xbf16, #tpu.memory_space<vmem>>, vector<8x256xbf16>,
    %c63_i32_92 = arith.constant 63 : i32
    %198 = tpu.dynamic_rotate %167 by %c63_i32_92 dim 1 : vector<8x256xf32>, i32 -> vector<8x256xf32>
    %c5_93 = arith.constant 5 : index
    %c0_94 = arith.constant 0 : index
    %199 = vector.load %arg1[%c5_93, %c0_94] : memref<27x256xf32, #tpu.memory_space<vmem>>, vector<1x256xf32>
    %200 = vector.broadcast %199 : vector<1x256xf32> to vector<8x256xf32>
    %201 = arith.mulf %198, %200 : vector<8x256xf32>
    %202 = arith.truncf %201 : vector<8x256xf32> to vector<8x256xbf16>
    %c40_95 = arith.constant 40 : index
    %c0_96 = arith.constant 0 : index
    %203 = vector.load %arg8[%c40_95, %c0_96] : memref<216x256xbf16, #tpu.memory_space<vmem>>, vector<8x256xbf16>
    tpu.vector_store %arg8[%c40_95, %c0_96], %202 {strides = array<i32>} : memref<216x256xbf16, #tpu.memory_space<vmem>>, vector<8x256xbf16>,
    %c57_i32_97 = arith.constant 57 : i32
    %204 = tpu.dynamic_rotate %167 by %c57_i32_97 dim 1 : vector<8x256xf32>, i32 -> vector<8x256xf32>
    %c6_98 = arith.constant 6 : index
    %c0_99 = arith.constant 0 : index
    %205 = vector.load %arg1[%c6_98, %c0_99] : memref<27x256xf32, #tpu.memory_space<vmem>>, vector<1x256xf32>
    %206 = vector.broadcast %205 : vector<1x256xf32> to vector<8x256xf32>
    %207 = arith.mulf %204, %206 : vector<8x256xf32>
    %208 = arith.truncf %207 : vector<8x256xf32> to vector<8x256xbf16>
    %c48_100 = arith.constant 48 : index
    %c0_101 = arith.constant 0 : index
    %209 = vector.load %arg8[%c48_100, %c0_101] : memref<216x256xbf16, #tpu.memory_space<vmem>>, vector<8x256xbf16>
    tpu.vector_store %arg8[%c48_100, %c0_101], %208 {strides = array<i32>} : memref<216x256xbf16, #tpu.memory_space<vmem>>, vector<8x256xbf16>,
    %c56_i32_102 = arith.constant 56 : i32
    %210 = tpu.dynamic_rotate %167 by %c56_i32_102 dim 1 : vector<8x256xf32>, i32 -> vector<8x256xf32>
    %c7_103 = arith.constant 7 : index
    %c0_104 = arith.constant 0 : index
    %211 = vector.load %arg1[%c7_103, %c0_104] : memref<27x256xf32, #tpu.memory_space<vmem>>, vector<1x256xf32>
    %212 = vector.broadcast %211 : vector<1x256xf32> to vector<8x256xf32>
    %213 = arith.mulf %210, %212 : vector<8x256xf32>
    %214 = arith.truncf %213 : vector<8x256xf32> to vector<8x256xbf16>
    %c56_105 = arith.constant 56 : index
    %c0_106 = arith.constant 0 : index
    %215 = vector.load %arg8[%c56_105, %c0_106] : memref<216x256xbf16, #tpu.memory_space<vmem>>, vector<8x256xbf16>
    tpu.vector_store %arg8[%c56_105, %c0_106], %214 {strides = array<i32>} : memref<216x256xbf16, #tpu.memory_space<vmem>>, vector<8x256xbf16>,
    %c55_i32_107 = arith.constant 55 : i32
    %216 = tpu.dynamic_rotate %167 by %c55_i32_107 dim 1 : vector<8x256xf32>, i32 -> vector<8x256xf32>
    %c8_108 = arith.constant 8 : index
    %c0_109 = arith.constant 0 : index
    %217 = vector.load %arg1[%c8_108, %c0_109] : memref<27x256xf32, #tpu.memory_space<vmem>>, vector<1x256xf32>
    %218 = vector.broadcast %217 : vector<1x256xf32> to vector<8x256xf32>
    %219 = arith.mulf %216, %218 : vector<8x256xf32>
    %220 = arith.truncf %219 : vector<8x256xf32> to vector<8x256xbf16>
    %c64_110 = arith.constant 64 : index
    %c0_111 = arith.constant 0 : index
    %221 = vector.load %arg8[%c64_110, %c0_111] : memref<216x256xbf16, #tpu.memory_space<vmem>>, vector<8x256xbf16>
    tpu.vector_store %arg8[%c64_110, %c0_111], %220 {strides = array<i32>} : memref<216x256xbf16, #tpu.memory_space<vmem>>, vector<8x256xbf16>,
    %c9_i32_112 = arith.constant 9 : i32
    %222 = tpu.dynamic_rotate %167 by %c9_i32_112 dim 1 : vector<8x256xf32>, i32 -> vector<8x256xf32>
    %c9_113 = arith.constant 9 : index
    %c0_114 = arith.constant 0 : index
    %223 = vector.load %arg1[%c9_113, %c0_114] : memref<27x256xf32, #tpu.memory_space<vmem>>, vector<1x256xf32>
    %224 = vector.broadcast %223 : vector<1x256xf32> to vector<8x256xf32>
    %225 = arith.mulf %222, %224 : vector<8x256xf32>
    %226 = arith.truncf %225 : vector<8x256xf32> to vector<8x256xbf16>
    %c72_115 = arith.constant 72 : index
    %c0_116 = arith.constant 0 : index
    %227 = vector.load %arg8[%c72_115, %c0_116] : memref<216x256xbf16, #tpu.memory_space<vmem>>, vector<8x256xbf16>
    tpu.vector_store %arg8[%c72_115, %c0_116], %226 {strides = array<i32>} : memref<216x256xbf16, #tpu.memory_space<vmem>>, vector<8x256xbf16>,
    %c8_i32_117 = arith.constant 8 : i32
    %228 = tpu.dynamic_rotate %167 by %c8_i32_117 dim 1 : vector<8x256xf32>, i32 -> vector<8x256xf32>
    %c10_118 = arith.constant 10 : index
    %c0_119 = arith.constant 0 : index
    %229 = vector.load %arg1[%c10_118, %c0_119] : memref<27x256xf32, #tpu.memory_space<vmem>>, vector<1x256xf32>
    %230 = vector.broadcast %229 : vector<1x256xf32> to vector<8x256xf32>
    %231 = arith.mulf %228, %230 : vector<8x256xf32>
    %232 = arith.truncf %231 : vector<8x256xf32> to vector<8x256xbf16>
    %c80_120 = arith.constant 80 : index
    %c0_121 = arith.constant 0 : index
    %233 = vector.load %arg8[%c80_120, %c0_121] : memref<216x256xbf16, #tpu.memory_space<vmem>>, vector<8x256xbf16>
    tpu.vector_store %arg8[%c80_120, %c0_121], %232 {strides = array<i32>} : memref<216x256xbf16, #tpu.memory_space<vmem>>, vector<8x256xbf16>,
    %c7_i32_122 = arith.constant 7 : i32
    %234 = tpu.dynamic_rotate %167 by %c7_i32_122 dim 1 : vector<8x256xf32>, i32 -> vector<8x256xf32>
    %c11_123 = arith.constant 11 : index
    %c0_124 = arith.constant 0 : index
    %235 = vector.load %arg1[%c11_123, %c0_124] : memref<27x256xf32, #tpu.memory_space<vmem>>, vector<1x256xf32>
    %236 = vector.broadcast %235 : vector<1x256xf32> to vector<8x256xf32>
    %237 = arith.mulf %234, %236 : vector<8x256xf32>
    %238 = arith.truncf %237 : vector<8x256xf32> to vector<8x256xbf16>
    %c88_125 = arith.constant 88 : index
    %c0_126 = arith.constant 0 : index
    %239 = vector.load %arg8[%c88_125, %c0_126] : memref<216x256xbf16, #tpu.memory_space<vmem>>, vector<8x256xbf16>
    tpu.vector_store %arg8[%c88_125, %c0_126], %238 {strides = array<i32>} : memref<216x256xbf16, #tpu.memory_space<vmem>>, vector<8x256xbf16>,
    %c1_i32_127 = arith.constant 1 : i32
    %240 = tpu.dynamic_rotate %167 by %c1_i32_127 dim 1 : vector<8x256xf32>, i32 -> vector<8x256xf32>
    %c12_128 = arith.constant 12 : index
    %c0_129 = arith.constant 0 : index
    %241 = vector.load %arg1[%c12_128, %c0_129] : memref<27x256xf32, #tpu.memory_space<vmem>>, vector<1x256xf32>
    %242 = vector.broadcast %241 : vector<1x256xf32> to vector<8x256xf32>
    %243 = arith.mulf %240, %242 : vector<8x256xf32>
    %244 = arith.truncf %243 : vector<8x256xf32> to vector<8x256xbf16>
    %c96_130 = arith.constant 96 : index
    %c0_131 = arith.constant 0 : index
    %245 = vector.load %arg8[%c96_130, %c0_131] : memref<216x256xbf16, #tpu.memory_space<vmem>>, vector<8x256xbf16>
    tpu.vector_store %arg8[%c96_130, %c0_131], %244 {strides = array<i32>} : memref<216x256xbf16, #tpu.memory_space<vmem>>, vector<8x256xbf16>,
    %246 = arith.truncf %167 : vector<8x256xf32> to vector<8x256xbf16>
    %c104_132 = arith.constant 104 : index
    %c0_133 = arith.constant 0 : index
    %247 = vector.load %arg8[%c104_132, %c0_133] : memref<216x256xbf16, #tpu.memory_space<vmem>>, vector<8x256xbf16>
    tpu.vector_store %arg8[%c104_132, %c0_133], %246 {strides = array<i32>} : memref<216x256xbf16, #tpu.memory_space<vmem>>, vector<8x256xbf16>,
    %c255_i32_134 = arith.constant 255 : i32
    %248 = tpu.dynamic_rotate %167 by %c255_i32_134 dim 1 : vector<8x256xf32>, i32 -> vector<8x256xf32>
    %c14_135 = arith.constant 14 : index
    %c0_136 = arith.constant 0 : index
    %249 = vector.load %arg1[%c14_135, %c0_136] : memref<27x256xf32, #tpu.memory_space<vmem>>, vector<1x256xf32>
    %250 = vector.broadcast %249 : vector<1x256xf32> to vector<8x256xf32>
    %251 = arith.mulf %248, %250 : vector<8x256xf32>
    %252 = arith.truncf %251 : vector<8x256xf32> to vector<8x256xbf16>
    %c112_137 = arith.constant 112 : index
    %c0_138 = arith.constant 0 : index
    %253 = vector.load %arg8[%c112_137, %c0_138] : memref<216x256xbf16, #tpu.memory_space<vmem>>, vector<8x256xbf16>
    tpu.vector_store %arg8[%c112_137, %c0_138], %252 {strides = array<i32>} : memref<216x256xbf16, #tpu.memory_space<vmem>>, vector<8x256xbf16>,
    %c249_i32_139 = arith.constant 249 : i32
    %254 = tpu.dynamic_rotate %167 by %c249_i32_139 dim 1 : vector<8x256xf32>, i32 -> vector<8x256xf32>
    %c15_140 = arith.constant 15 : index
    %c0_141 = arith.constant 0 : index
    %255 = vector.load %arg1[%c15_140, %c0_141] : memref<27x256xf32, #tpu.memory_space<vmem>>, vector<1x256xf32>
    %256 = vector.broadcast %255 : vector<1x256xf32> to vector<8x256xf32>
    %257 = arith.mulf %254, %256 : vector<8x256xf32>
    %258 = arith.truncf %257 : vector<8x256xf32> to vector<8x256xbf16>
    %c120_142 = arith.constant 120 : index
    %c0_143 = arith.constant 0 : index
    %259 = vector.load %arg8[%c120_142, %c0_143] : memref<216x256xbf16, #tpu.memory_space<vmem>>, vector<8x256xbf16>
    tpu.vector_store %arg8[%c120_142, %c0_143], %258 {strides = array<i32>} : memref<216x256xbf16, #tpu.memory_space<vmem>>, vector<8x256xbf16>,
    %c248_i32_144 = arith.constant 248 : i32
    %260 = tpu.dynamic_rotate %167 by %c248_i32_144 dim 1 : vector<8x256xf32>, i32 -> vector<8x256xf32>
    %c16_145 = arith.constant 16 : index
    %c0_146 = arith.constant 0 : index
    %261 = vector.load %arg1[%c16_145, %c0_146] : memref<27x256xf32, #tpu.memory_space<vmem>>, vector<1x256xf32>
    %262 = vector.broadcast %261 : vector<1x256xf32> to vector<8x256xf32>
    %263 = arith.mulf %260, %262 : vector<8x256xf32>
    %264 = arith.truncf %263 : vector<8x256xf32> to vector<8x256xbf16>
    %c128_147 = arith.constant 128 : index
    %c0_148 = arith.constant 0 : index
    %265 = vector.load %arg8[%c128_147, %c0_148] : memref<216x256xbf16, #tpu.memory_space<vmem>>, vector<8x256xbf16>
    tpu.vector_store %arg8[%c128_147, %c0_148], %264 {strides = array<i32>} : memref<216x256xbf16, #tpu.memory_space<vmem>>, vector<8x256xbf16>,
    %c247_i32_149 = arith.constant 247 : i32
    %266 = tpu.dynamic_rotate %167 by %c247_i32_149 dim 1 : vector<8x256xf32>, i32 -> vector<8x256xf32>
    %c17_150 = arith.constant 17 : index
    %c0_151 = arith.constant 0 : index
    %267 = vector.load %arg1[%c17_150, %c0_151] : memref<27x256xf32, #tpu.memory_space<vmem>>, vector<1x256xf32>
    %268 = vector.broadcast %267 : vector<1x256xf32> to vector<8x256xf32>
    %269 = arith.mulf %266, %268 : vector<8x256xf32>
    %270 = arith.truncf %269 : vector<8x256xf32> to vector<8x256xbf16>
    %c136_152 = arith.constant 136 : index
    %c0_153 = arith.constant 0 : index
    %271 = vector.load %arg8[%c136_152, %c0_153] : memref<216x256xbf16, #tpu.memory_space<vmem>>, vector<8x256xbf16>
    tpu.vector_store %arg8[%c136_152, %c0_153], %270 {strides = array<i32>} : memref<216x256xbf16, #tpu.memory_space<vmem>>, vector<8x256xbf16>,
    %c201_i32_154 = arith.constant 201 : i32
    %272 = tpu.dynamic_rotate %167 by %c201_i32_154 dim 1 : vector<8x256xf32>, i32 -> vector<8x256xf32>
    %c18_155 = arith.constant 18 : index
    %c0_156 = arith.constant 0 : index
    %273 = vector.load %arg1[%c18_155, %c0_156] : memref<27x256xf32, #tpu.memory_space<vmem>>, vector<1x256xf32>
    %274 = vector.broadcast %273 : vector<1x256xf32> to vector<8x256xf32>
    %275 = arith.mulf %272, %274 : vector<8x256xf32>
    %276 = arith.truncf %275 : vector<8x256xf32> to vector<8x256xbf16>
    %c144_157 = arith.constant 144 : index
    %c0_158 = arith.constant 0 : index
    %277 = vector.load %arg8[%c144_157, %c0_158] : memref<216x256xbf16, #tpu.memory_space<vmem>>, vector<8x256xbf16>
    tpu.vector_store %arg8[%c144_157, %c0_158], %276 {strides = array<i32>} : memref<216x256xbf16, #tpu.memory_space<vmem>>, vector<8x256xbf16>,
    %c200_i32_159 = arith.constant 200 : i32
    %278 = tpu.dynamic_rotate %167 by %c200_i32_159 dim 1 : vector<8x256xf32>, i32 -> vector<8x256xf32>
    %c19_160 = arith.constant 19 : index
    %c0_161 = arith.constant 0 : index
    %279 = vector.load %arg1[%c19_160, %c0_161] : memref<27x256xf32, #tpu.memory_space<vmem>>, vector<1x256xf32>
    %280 = vector.broadcast %279 : vector<1x256xf32> to vector<8x256xf32>
    %281 = arith.mulf %278, %280 : vector<8x256xf32>
    %282 = arith.truncf %281 : vector<8x256xf32> to vector<8x256xbf16>
    %c152_162 = arith.constant 152 : index
    %c0_163 = arith.constant 0 : index
    %283 = vector.load %arg8[%c152_162, %c0_163] : memref<216x256xbf16, #tpu.memory_space<vmem>>, vector<8x256xbf16>
    tpu.vector_store %arg8[%c152_162, %c0_163], %282 {strides = array<i32>} : memref<216x256xbf16, #tpu.memory_space<vmem>>, vector<8x256xbf16>,
    %c199_i32_164 = arith.constant 199 : i32
    %284 = tpu.dynamic_rotate %167 by %c199_i32_164 dim 1 : vector<8x256xf32>, i32 -> vector<8x256xf32>
    %c20_165 = arith.constant 20 : index
    %c0_166 = arith.constant 0 : index
    %285 = vector.load %arg1[%c20_165, %c0_166] : memref<27x256xf32, #tpu.memory_space<vmem>>, vector<1x256xf32>
    %286 = vector.broadcast %285 : vector<1x256xf32> to vector<8x256xf32>
    %287 = arith.mulf %284, %286 : vector<8x256xf32>
    %288 = arith.truncf %287 : vector<8x256xf32> to vector<8x256xbf16>
    %c160_167 = arith.constant 160 : index
    %c0_168 = arith.constant 0 : index
    %289 = vector.load %arg8[%c160_167, %c0_168] : memref<216x256xbf16, #tpu.memory_space<vmem>>, vector<8x256xbf16>
    tpu.vector_store %arg8[%c160_167, %c0_168], %288 {strides = array<i32>} : memref<216x256xbf16, #tpu.memory_space<vmem>>, vector<8x256xbf16>,
    %c193_i32_169 = arith.constant 193 : i32
    %290 = tpu.dynamic_rotate %167 by %c193_i32_169 dim 1 : vector<8x256xf32>, i32 -> vector<8x256xf32>
    %c21_170 = arith.constant 21 : index
    %c0_171 = arith.constant 0 : index
    %291 = vector.load %arg1[%c21_170, %c0_171] : memref<27x256xf32, #tpu.memory_space<vmem>>, vector<1x256xf32>
    %292 = vector.broadcast %291 : vector<1x256xf32> to vector<8x256xf32>
    %293 = arith.mulf %290, %292 : vector<8x256xf32>
    %294 = arith.truncf %293 : vector<8x256xf32> to vector<8x256xbf16>
    %c168_172 = arith.constant 168 : index
    %c0_173 = arith.constant 0 : index
    %295 = vector.load %arg8[%c168_172, %c0_173] : memref<216x256xbf16, #tpu.memory_space<vmem>>, vector<8x256xbf16>
    tpu.vector_store %arg8[%c168_172, %c0_173], %294 {strides = array<i32>} : memref<216x256xbf16, #tpu.memory_space<vmem>>, vector<8x256xbf16>,
    %c192_i32_174 = arith.constant 192 : i32
    %296 = tpu.dynamic_rotate %167 by %c192_i32_174 dim 1 : vector<8x256xf32>, i32 -> vector<8x256xf32>
    %c22_175 = arith.constant 22 : index
    %c0_176 = arith.constant 0 : index
    %297 = vector.load %arg1[%c22_175, %c0_176] : memref<27x256xf32, #tpu.memory_space<vmem>>, vector<1x256xf32>
    %298 = vector.broadcast %297 : vector<1x256xf32> to vector<8x256xf32>
    %299 = arith.mulf %296, %298 : vector<8x256xf32>
    %300 = arith.truncf %299 : vector<8x256xf32> to vector<8x256xbf16>
    %c176_177 = arith.constant 176 : index
    %c0_178 = arith.constant 0 : index
    %301 = vector.load %arg8[%c176_177, %c0_178] : memref<216x256xbf16, #tpu.memory_space<vmem>>, vector<8x256xbf16>
    tpu.vector_store %arg8[%c176_177, %c0_178], %300 {strides = array<i32>} : memref<216x256xbf16, #tpu.memory_space<vmem>>, vector<8x256xbf16>,
    %c191_i32_179 = arith.constant 191 : i32
    %302 = tpu.dynamic_rotate %167 by %c191_i32_179 dim 1 : vector<8x256xf32>, i32 -> vector<8x256xf32>
    %c23_180 = arith.constant 23 : index
    %c0_181 = arith.constant 0 : index
    %303 = vector.load %arg1[%c23_180, %c0_181] : memref<27x256xf32, #tpu.memory_space<vmem>>, vector<1x256xf32>
    %304 = vector.broadcast %303 : vector<1x256xf32> to vector<8x256xf32>
    %305 = arith.mulf %302, %304 : vector<8x256xf32>
    %306 = arith.truncf %305 : vector<8x256xf32> to vector<8x256xbf16>
    %c184_182 = arith.constant 184 : index
    %c0_183 = arith.constant 0 : index
    %307 = vector.load %arg8[%c184_182, %c0_183] : memref<216x256xbf16, #tpu.memory_space<vmem>>, vector<8x256xbf16>
    tpu.vector_store %arg8[%c184_182, %c0_183], %306 {strides = array<i32>} : memref<216x256xbf16, #tpu.memory_space<vmem>>, vector<8x256xbf16>,
    %c185_i32_184 = arith.constant 185 : i32
    %308 = tpu.dynamic_rotate %167 by %c185_i32_184 dim 1 : vector<8x256xf32>, i32 -> vector<8x256xf32>
    %c24_185 = arith.constant 24 : index
    %c0_186 = arith.constant 0 : index
    %309 = vector.load %arg1[%c24_185, %c0_186] : memref<27x256xf32, #tpu.memory_space<vmem>>, vector<1x256xf32>
    %310 = vector.broadcast %309 : vector<1x256xf32> to vector<8x256xf32>
    %311 = arith.mulf %308, %310 : vector<8x256xf32>
    %312 = arith.truncf %311 : vector<8x256xf32> to vector<8x256xbf16>
    %c192_187 = arith.constant 192 : index
    %c0_188 = arith.constant 0 : index
    %313 = vector.load %arg8[%c192_187, %c0_188] : memref<216x256xbf16, #tpu.memory_space<vmem>>, vector<8x256xbf16>
    tpu.vector_store %arg8[%c192_187, %c0_188], %312 {strides = array<i32>} : memref<216x256xbf16, #tpu.memory_space<vmem>>, vector<8x256xbf16>,
    %c184_i32_189 = arith.constant 184 : i32
    %314 = tpu.dynamic_rotate %167 by %c184_i32_189 dim 1 : vector<8x256xf32>, i32 -> vector<8x256xf32>
    %c25_190 = arith.constant 25 : index
    %c0_191 = arith.constant 0 : index
    %315 = vector.load %arg1[%c25_190, %c0_191] : memref<27x256xf32, #tpu.memory_space<vmem>>, vector<1x256xf32>
    %316 = vector.broadcast %315 : vector<1x256xf32> to vector<8x256xf32>
    %317 = arith.mulf %314, %316 : vector<8x256xf32>
    %318 = arith.truncf %317 : vector<8x256xf32> to vector<8x256xbf16>
    %c200_192 = arith.constant 200 : index
    %c0_193 = arith.constant 0 : index
    %319 = vector.load %arg8[%c200_192, %c0_193] : memref<216x256xbf16, #tpu.memory_space<vmem>>, vector<8x256xbf16>
    tpu.vector_store %arg8[%c200_192, %c0_193], %318 {strides = array<i32>} : memref<216x256xbf16, #tpu.memory_space<vmem>>, vector<8x256xbf16>,
    %c183_i32_194 = arith.constant 183 : i32
    %320 = tpu.dynamic_rotate %167 by %c183_i32_194 dim 1 : vector<8x256xf32>, i32 -> vector<8x256xf32>
    %c26_195 = arith.constant 26 : index
    %c0_196 = arith.constant 0 : index
    %321 = vector.load %arg1[%c26_195, %c0_196] : memref<27x256xf32, #tpu.memory_space<vmem>>, vector<1x256xf32>
    %322 = vector.broadcast %321 : vector<1x256xf32> to vector<8x256xf32>
    %323 = arith.mulf %320, %322 : vector<8x256xf32>
    %324 = arith.truncf %323 : vector<8x256xf32> to vector<8x256xbf16>
    %c208_197 = arith.constant 208 : index
    %c0_198 = arith.constant 0 : index
    %325 = vector.load %arg8[%c208_197, %c0_198] : memref<216x256xbf16, #tpu.memory_space<vmem>>, vector<8x256xbf16>
    tpu.vector_store %arg8[%c208_197, %c0_198], %324 {strides = array<i32>} : memref<216x256xbf16, #tpu.memory_space<vmem>>, vector<8x256xbf16>,
    %c0_199 = arith.constant 0 : index
    %c0_200 = arith.constant 0 : index
    %326 = vector.load %arg5[%c0_199, %c0_200] : memref<8x216xbf16, #tpu.memory_space<vmem>>, vector<8x216xbf16>
    %c0_201 = arith.constant 0 : index
    %c0_202 = arith.constant 0 : index
    %327 = vector.load %arg8[%c0_201, %c0_202] : memref<216x256xbf16, #tpu.memory_space<vmem>>, vector<216x256xbf16>
    %cst_203 = arith.constant dense<0.000000e+00> : vector<8x256xf32>
    %328 = tpu.matmul %326, %327, %cst_203 {dimension_numbers = #tpu.dot_dimension_numbers<[1], [0], [0], [1], [0, 0, 1, 1], [], []>} : vector<8x216xbf16>, vector<216x256xbf16>, vector<8x256xf32> -> vector<8x256xf32>
    %c0_204 = arith.constant 0 : index
    %c0_205 = arith.constant 0 : index
    %329 = vector.load %arg6[%c0_204, %c0_205] : memref<8x1xf32, #tpu.memory_space<vmem>>, vector<8x1xf32>
    %330 = vector.broadcast %329 : vector<8x1xf32> to vector<8x256xf32>
    %331 = arith.addf %328, %330 : vector<8x256xf32>
    %cst_206 = arith.constant 1.000000e-01 : f32
    %332 = vector.broadcast %cst_206 : f32 to vector<8x256xf32>
    %333 = arith.mulf %331, %332 : vector<8x256xf32>
    %334 = arith.addf %333, %1 : vector<8x256xf32>
    %c0_207 = arith.constant 0 : index
    %c0_208 = arith.constant 0 : index
    %c0_209 = arith.constant 0 : index
    %335 = vector.load %arg7[%c0_207, %c0_208, %c0_209] : memref<1x8x256xf32, #tpu.memory_space<vmem>>, vector<1x8x256xf32>
    %336 = vector.shape_cast %335 : vector<1x8x256xf32> to vector<8x256xf32>
    %337 = vector.shape_cast %334 : vector<8x256xf32> to vector<1x8x256xf32>
    tpu.vector_store %arg7[%c0_207, %c0_208, %c0_209], %337 {strides = array<i32>} : memref<1x8x256xf32, #tpu.memory_space<vmem>>, vector<1x8x256xf32>,
    return
  }
  func.func @transform_0(%arg0: i32) -> (i32, i32) {
    %c0_i32 = arith.constant 0 : i32
    %c0_i32_0 = arith.constant 0 : i32
    %c0_i32_1 = arith.constant 0 : i32
    return %c0_i32, %c0_i32_0 : i32, i32
  }
  func.func @transform_1(%arg0: i32) -> (i32, i32, i32) {
    %c0_i32 = arith.constant 0 : i32
    %c0_i32_0 = arith.constant 0 : i32
    %c0_i32_1 = arith.constant 0 : i32
    return %arg0, %c0_i32, %c0_i32_0 : i32, i32, i32
  }
  func.func @transform_2(%arg0: i32) -> (i32, i32) {
    %c0_i32 = arith.constant 0 : i32
    %c0_i32_0 = arith.constant 0 : i32
    %c0_i32_1 = arith.constant 0 : i32
    return %c0_i32, %c0_i32_0 : i32, i32
  }
  func.func @transform_3(%arg0: i32) -> (i32, i32) {
    %c0_i32 = arith.constant 0 : i32
    %c0_i32_0 = arith.constant 0 : i32
    %c0_i32_1 = arith.constant 0 : i32
    return %c0_i32, %c0_i32_0 : i32, i32
  }
  func.func @transform_4(%arg0: i32) -> (i32, i32) {
    %c0_i32 = arith.constant 0 : i32
    %c0_i32_0 = arith.constant 0 : i32
    %c0_i32_1 = arith.constant 0 : i32
    return %c0_i32, %c0_i32_0 : i32, i32
  }
  func.func @transform_5(%arg0: i32) -> (i32, i32) {
    %c0_i32 = arith.constant 0 : i32
    %c0_i32_0 = arith.constant 0 : i32
    %c0_i32_1 = arith.constant 0 : i32
    return %c0_i32, %c0_i32_0 : i32, i32
  }
  func.func @transform_6(%arg0: i32) -> (i32, i32, i32) {
    %c0_i32 = arith.constant 0 : i32
    %c0_i32_0 = arith.constant 0 : i32
    %c0_i32_1 = arith.constant 0 : i32
    return %arg0, %c0_i32, %c0_i32_0 : i32, i32, i32
  }
}

</mosaic_0001>

<llo_original>
// kernel: resblock_forward.1
$region0: #{resblock_forward.1}
  #allocation0 [shape = 'u32[]', space=smem, size = 0x4, offset = 0x4, fixed_abs, tag = 'smem constant byte address 0x4 - core index']
  #allocation1 [shape = 'u32[144,128]{1,0:T(1,128)}', space=vmem, size = 0x12000, scoped, tag = 'internal scratch']
  #allocation2 [shape = 'bf16[216,256]{1,0:T(8,128)(2,1)}', space=vmem, size = 0x1b000, scoped, tag = 'scratch operand']
  %s0 = inlined_call_operand.vmem [shape: f32[27,256], index: 0, kind: input, shape index: {}]
  %s1 = inlined_call_operand.vmem [shape: f32[2,8,256], index: 1, kind: input, shape index: {}]
  %s2 = inlined_call_operand.vmem [shape: bf16[8,216], index: 2, kind: input, shape index: {}]
  %s3 = inlined_call_operand.vmem [shape: f32[8,1], index: 3, kind: input, shape index: {}]
  %s4 = inlined_call_operand.vmem [shape: bf16[8,216], index: 4, kind: input, shape index: {}]
  %s5 = inlined_call_operand.vmem [shape: f32[8,1], index: 5, kind: input, shape index: {}]
  %s6 = inlined_call_operand.vmem [shape: f32[2,8,256], index: 6, kind: output, shape index: {}]
  %s7 = sld [smem:[#allocation0]]
  $region57: #{resblock_forward.1} parent=0
    _
  %s9 = ssub.s32 1, %s7
  %s10 = scalar_select 0, %s9, %s7
  loop: start=0, step=1, limit=4
  $region2: #{resblock_forward.1} parent=0 // loop_pre_header
    _
  $region3: #{resblock_forward.1} parent=0 // loop_header
    %s12 = sphi 0, %s16
    %p13 = scmp.ge.s32.totalorder %s12, 4
    %s20 = sphi 0, %s20
    %s22 = sphi 0, %s20
    %s23 = sphi 0, %s22
    %s37 = sphi 0, %s23
    %s43 = sphi 0, %s45
    %s46 = sphi 0, %s43
    %s47 = sphi 0, %s46
    %s63 = sphi 0, %s47
    %s67 = sphi 0, %s67
    %s69 = sphi 0, %s67
    %s70 = sphi 0, %s69
    %s84 = sphi 0, %s70
    %s88 = sphi 0, %s88
    %s90 = sphi 0, %s88
    %s91 = sphi 0, %s90
    %s105 = sphi 0, %s91
    %s109 = sphi 0, %s109
    %s111 = sphi 0, %s109
    %s112 = sphi 0, %s111
    %s126 = sphi 0, %s112
    %s130 = sphi 0, %s130
    %s132 = sphi 0, %s130
    %s133 = sphi 0, %s132
    %s147 = sphi 0, %s133
    %s153 = sphi 0, %s155
    %s156 = sphi 0, %s153
    %s157 = sphi 0, %s156
    %s173 = sphi 0, %s157
  $region4: #{resblock_forward.1} parent=0 // loop_header_branch
    %15 = sbr.rel (%p13) target = $region8
  $region5: #{resblock_forward.1} parent=0 // loop_body
    %s17 = ssub.s32 %s12, 1
    %s18 = ssub.s32 %s12, 2
    %s19 = sadd.s32 %s12, 1
    %s21 = sadd.s32 %s20, 1
    %p24 = scmp.eq.s32.totalorder %s12, 1
    %p25 = scmp.ne.s32.totalorder %s20, %s22
    %p26 = scmp.eq.s32.totalorder %s12, 0
    %p27 = por %p25, %p26
    %p28 = scmp.ne.s32.totalorder %s20, %s22
    %p29 = scmp.eq.s32.totalorder %s17, 1
    %p30 = por %p28, %p29
    %p31 = scmp.ne.s32.totalorder %s22, %s23
    %p32 = scmp.eq.s32.totalorder %s17, 0
    %p33 = por %p31, %p32
    %p34 = scmp.ne.s32.totalorder %s22, %s23
    %p35 = scmp.eq.s32.totalorder %s18, 1
    %p36 = por %p34, %p35
    %p38 = scmp.ne.s32.totalorder %s23, %s37
    %p39 = scmp.eq.s32.totalorder %s18, 0
    %p40 = por %p38, %p39
    %s41 = ssub.s32 %s12, %s19
    %p42 = scmp.eq.s32.totalorder %s41, 0
    %s44 = sadd.s32 %s43, 1
    %s45 = scalar_select %p42, %s43, %s44
    %p48 = pneg %p42
    %p49 = scmp.eq.s32.totalorder %s12, 1
    %p50 = por %p48, %p49
    %p51 = scmp.ne.s32.totalorder %s43, %s46
    %p52 = scmp.eq.s32.totalorder %s12, 0
    %p53 = por %p51, %p52
    %p54 = scmp.ne.s32.totalorder %s43, %s46
    %p55 = scmp.eq.s32.totalorder %s17, 1
    %p56 = por %p54, %p55
    %p57 = scmp.ne.s32.totalorder %s46, %s47
    %p58 = scmp.eq.s32.totalorder %s17, 0
    %p59 = por %p57, %p58
    %p60 = scmp.ne.s32.totalorder %s46, %s47
    %p61 = scmp.eq.s32.totalorder %s18, 1
    %p62 = por %p60, %p61
    %p64 = scmp.ne.s32.totalorder %s47, %s63
    %p65 = scmp.eq.s32.totalorder %s18, 0
    %p66 = por %p64, %p65
    %s68 = sadd.s32 %s67, 1
    %p71 = scmp.eq.s32.totalorder %s12, 1
    %p72 = scmp.ne.s32.totalorder %s67, %s69
    %p73 = scmp.eq.s32.totalorder %s12, 0
    %p74 = por %p72, %p73
    %p75 = scmp.ne.s32.totalorder %s67, %s69
    %p76 = scmp.eq.s32.totalorder %s17, 1
    %p77 = por %p75, %p76
    %p78 = scmp.ne.s32.totalorder %s69, %s70
    %p79 = scmp.eq.s32.totalorder %s17, 0
    %p80 = por %p78, %p79
    %p81 = scmp.ne.s32.totalorder %s69, %s70
    %p82 = scmp.eq.s32.totalorder %s18, 1
    %p83 = por %p81, %p82
    %p85 = scmp.ne.s32.totalorder %s70, %s84
    %p86 = scmp.eq.s32.totalorder %s18, 0
    %p87 = por %p85, %p86
    %s89 = sadd.s32 %s88, 1
    %p92 = scmp.eq.s32.totalorder %s12, 1
    %p93 = scmp.ne.s32.totalorder %s88, %s90
    %p94 = scmp.eq.s32.totalorder %s12, 0
    %p95 = por %p93, %p94
    %p96 = scmp.ne.s32.totalorder %s88, %s90
    %p97 = scmp.eq.s32.totalorder %s17, 1
    %p98 = por %p96, %p97
    %p99 = scmp.ne.s32.totalorder %s90, %s91
    %p100 = scmp.eq.s32.totalorder %s17, 0
    %p101 = por %p99, %p100
    %p102 = scmp.ne.s32.totalorder %s90, %s91
    %p103 = scmp.eq.s32.totalorder %s18, 1
    %p104 = por %p102, %p103
    %p106 = scmp.ne.s32.totalorder %s91, %s105
    %p107 = scmp.eq.s32.totalorder %s18, 0
    %p108 = por %p106, %p107
    %s110 = sadd.s32 %s109, 1
    %p113 = scmp.eq.s32.totalorder %s12, 1
    %p114 = scmp.ne.s32.totalorder %s109, %s111
    %p115 = scmp.eq.s32.totalorder %s12, 0
    %p116 = por %p114, %p115
    %p117 = scmp.ne.s32.totalorder %s109, %s111
    %p118 = scmp.eq.s32.totalorder %s17, 1
    %p119 = por %p117, %p118
    %p120 = scmp.ne.s32.totalorder %s111, %s112
    %p121 = scmp.eq.s32.totalorder %s17, 0
    %p122 = por %p120, %p121
    %p123 = scmp.ne.s32.totalorder %s111, %s112
    %p124 = scmp.eq.s32.totalorder %s18, 1
    %p125 = por %p123, %p124
    %p127 = scmp.ne.s32.totalorder %s112, %s126
    %p128 = scmp.eq.s32.totalorder %s18, 0
    %p129 = por %p127, %p128
    %s131 = sadd.s32 %s130, 1
    %p134 = scmp.eq.s32.totalorder %s12, 1
    %p135 = scmp.ne.s32.totalorder %s130, %s132
    %p136 = scmp.eq.s32.totalorder %s12, 0
    %p137 = por %p135, %p136
    %p138 = scmp.ne.s32.totalorder %s130, %s132
    %p139 = scmp.eq.s32.totalorder %s17, 1
    %p140 = por %p138, %p139
    %p141 = scmp.ne.s32.totalorder %s132, %s133
    %p142 = scmp.eq.s32.totalorder %s17, 0
    %p143 = por %p141, %p142
    %p144 = scmp.ne.s32.totalorder %s132, %s133
    %p145 = scmp.eq.s32.totalorder %s18, 1
    %p146 = por %p144, %p145
    %p148 = scmp.ne.s32.totalorder %s133, %s147
    %p149 = scmp.eq.s32.totalorder %s18, 0
    %p150 = por %p148, %p149
    %s151 = ssub.s32 %s12, %s19
    %p152 = scmp.eq.s32.totalorder %s151, 0
    %s154 = sadd.s32 %s153, 1
    %s155 = scalar_select %p152, %s153, %s154
    %p158 = pneg %p152
    %p159 = scmp.eq.s32.totalorder %s12, 1
    %p160 = por %p158, %p159
    %p161 = scmp.ne.s32.totalorder %s153, %s156
    %p162 = scmp.eq.s32.totalorder %s12, 0
    %p163 = por %p161, %p162
    %p164 = scmp.ne.s32.totalorder %s153, %s156
    %p165 = scmp.eq.s32.totalorder %s17, 1
    %p166 = por %p164, %p165
    %p167 = scmp.ne.s32.totalorder %s156, %s157
    %p168 = scmp.eq.s32.totalorder %s17, 0
    %p169 = por %p167, %p168
    %p170 = scmp.ne.s32.totalorder %s156, %s157
    %p171 = scmp.eq.s32.totalorder %s18, 1
    %p172 = por %p170, %p171
    %p174 = scmp.ne.s32.totalorder %s157, %s173
    %p175 = scmp.eq.s32.totalorder %s18, 0
    %p176 = por %p174, %p175
    %p177 = scmp.le.s32.totalorder 1, %s12
    %p178 = scmp.lt.s32.totalorder %s12, 3
    %p179 = pnand %p177, %p178
    %p180 = pneg %p179
    // Predicated region
    $region9: #{resblock_forward.1} parent=5 // pred_check
      _
    $region10: #{resblock_forward.1} parent=5 // pred_check_branch
      %182 = sbr.rel (%p179) target = $region12
    $region11: #{resblock_forward.1} parent=5 // pred_region
      %s183 = ssub.s32 %s12, 1
      // Predicated region
      $region13: #{resblock_forward.1} parent=11 // pred_check
        %p184 = pneg %p33
      $region14: #{resblock_forward.1} parent=11 // pred_check_branch
        %186 = sbr.rel (%p184) target = $region16
      $region15: #{resblock_forward.1} parent=11 // pred_region
        _
      $region16: #{resblock_forward.1} parent=11 // pred_fallthru
        _
      // Predicated region
      $region17: #{resblock_forward.1} parent=11 // pred_check
        %p187 = pneg %p80
      $region18: #{resblock_forward.1} parent=11 // pred_check_branch
        %189 = sbr.rel (%p187) target = $region20
      $region19: #{resblock_forward.1} parent=11 // pred_region
        _
      $region20: #{resblock_forward.1} parent=11 // pred_fallthru
        _
      // Predicated region
      $region21: #{resblock_forward.1} parent=11 // pred_check
        %p190 = pneg %p101
      $region22: #{resblock_forward.1} parent=11 // pred_check_branch
        %192 = sbr.rel (%p190) target = $region24
      $region23: #{resblock_forward.1} parent=11 // pred_region
        _
      $region24: #{resblock_forward.1} parent=11 // pred_fallthru
        _
      // Predicated region
      $region25: #{resblock_forward.1} parent=11 // pred_check
        %p193 = pneg %p122
      $region26: #{resblock_forward.1} parent=11 // pred_check_branch
        %195 = sbr.rel (%p193) target = $region28
      $region27: #{resblock_forward.1} parent=11 // pred_region
        _
      $region28: #{resblock_forward.1} parent=11 // pred_fallthru
        _
      // Predicated region
      $region29: #{resblock_forward.1} parent=11 // pred_check
        %p196 = pneg %p143
      $region30: #{resblock_forward.1} parent=11 // pred_check_branch
        %198 = sbr.rel (%p196) target = $region32
      $region31: #{resblock_forward.1} parent=11 // pred_region
        _
      $region32: #{resblock_forward.1} parent=11 // pred_fallthru
        _
    $region12: #{resblock_forward.1} parent=5 // pred_fallthru
      _
    %p199 = scmp.lt.s32.totalorder %s12, 2
    // Predicated region
    $region33: #{resblock_forward.1} parent=5 // pred_check
      %p200 = pneg %p199
    $region34: #{resblock_forward.1} parent=5 // pred_check_branch
      %202 = sbr.rel (%p200) target = $region36
    $region35: #{resblock_forward.1} parent=5 // pred_region
      // Predicated region
      $region37: #{resblock_forward.1} parent=35 // pred_check
        %p203 = pneg %p53
      $region38: #{resblock_forward.1} parent=35 // pred_check_branch
        %205 = sbr.rel (%p203) target = $region40
      $region39: #{resblock_forward.1} parent=35 // pred_region
        %p206 = scmp.lt.s32.totalorder %s12, 1
        %s207 = scalar_select %p206, %s12, 1
        %s208 = smul.addr %s207, 2
        %s209 = smul.addr %s208, 8
        %s210 = scalar_lea.vmem %s1, %s209
      $region40: #{resblock_forward.1} parent=35 // pred_fallthru
        _
    $region36: #{resblock_forward.1} parent=5 // pred_fallthru
      _
    %p211 = scmp.le.s32.totalorder 1, %s12
    %p212 = scmp.lt.s32.totalorder %s12, 3
    %p213 = pnand %p211, %p212
    %p214 = pneg %p213
    // Predicated region
    $region41: #{resblock_forward.1} parent=5 // pred_check
      _
    $region42: #{resblock_forward.1} parent=5 // pred_check_branch
      %216 = sbr.rel (%p213) target = $region44
    $region43: #{resblock_forward.1} parent=5 // pred_region
      %s217 = ssub.s32 %s12, 1
      %p218 = pneg %p33
      %p219 = pneg %p30
      %p220 = scmp.lt.s32.totalorder %s17, 1
      %s221 = scalar_select %p220, %s17, 1
      %s222 = smul.addr %s221, 2
      %s223 = smul.addr %s222, 8
      %s224 = scalar_lea.vmem %s1, %s223
      %p225 = pneg %p59
      %p226 = pneg %p56
      %p227 = pneg %p80
      %p228 = pneg %p77
      %p229 = pneg %p101
      %p230 = pneg %p98
      %p231 = pneg %p122
      %p232 = pneg %p119
      %p233 = pneg %p143
      %p234 = pneg %p140
      %p235 = pneg %p169
      %p236 = pneg %p166
      %p237 = scmp.lt.s32.totalorder %s17, 1
      %s238 = scalar_select %p237, %s17, 1
      %s239 = smul.addr %s238, 2
      %s240 = smul.addr %s239, 8
      %s241 = scalar_lea.vmem %s6, %s240
      %p242 = scmp.lt.s32.totalorder %s17, 1
      %s243 = scalar_select %p242, %s17, 1
      %s244 = smul.addr %s243, 2
      %s245 = smul.addr %s244, 8
      %s246 = scalar_lea.vmem %s1, %s245
      %p247 = scmp.lt.s32.totalorder %s17, 1
      %s248 = scalar_select %p247, %s17, 1
      %s249 = smul.addr %s248, 2
      %s250 = smul.addr %s249, 8
      %s251 = scalar_lea.vmem %s6, %s250
      %v253 = vld [vmem:[%s246] sm:$0xff]
      %v254 = vld [vmem:[%s246 + $0x8] sm:$0xff]
      %255 = vrot.lane.b32.xlu0 %v253, 73
      %v256 = vpop.permute.xlu0 %255
      %257 = vrot.lane.b32.xlu0 %v254, 73
      %v258 = vpop.permute.xlu0 %257
      %v259 = vlaneseq
      %v260 = vand.u32 %v259, 127
      %vm261 = vcmp.lt.s32.totalorder %v260, 73
      %v262 = vsel %vm261, %v256, %v258
      %v263 = vsel %vm261, %v258, %v256
      %v264 = vld [vmem:[%s0] ss:$8 sm:$0x3]
      %v266 = vlaneseq
      %v267 = vshrl.u32 %v266, 7
      %v268 = vsub.s32 0, %v267
      %v269 = vrot.slane %v264, %v268
      %v270 = vlaneseq
      %v271 = vshrl.u32 %v270, 7
      %v272 = vsub.s32 1, %v271
      %v273 = vrot.slane %v264, %v272
      %v276 = vmul.f32 %v263, %v269
      %v277 = vmul.f32 %v262, %v273
      %v278 = vpack.c.bf16 %v276, %v276
      %v279 = vpack.c.bf16 %v277, %v277
      %v282 = vunpack.c.l.b16 %v278
      %v283 = vunpack.c.l.b16 %v279
      %v284 = vpack.c.b16 %v283, %v282
      %286 = vst [vmem:[#allocation2] sm:$0xff] %v284
      %287 = vrot.lane.b32.xlu0 %v253, 72
      %v288 = vpop.permute.xlu0 %287
      %289 = vrot.lane.b32.xlu0 %v254, 72
      %v290 = vpop.permute.xlu0 %289
      %vm291 = vcmp.lt.s32.totalorder %v260, 72
      %v292 = vsel %vm291, %v288, %v290
      %v293 = vsel %vm291, %v290, %v288
      %s294 = scalar_lea.vmem %s0, 1
      %v295 = vld [vmem:[%s294] ss:$8 sm:$0x3]
      %v297 = vlaneseq
      %v298 = vshrl.u32 %v297, 7
      %v299 = vsub.s32 0, %v298
      %v300 = vrot.slane %v295, %v299
      %v301 = vlaneseq
      %v302 = vshrl.u32 %v301, 7
      %v303 = vsub.s32 1, %v302
      %v304 = vrot.slane %v295, %v303
      %v307 = vmul.f32 %v293, %v300
      %v308 = vmul.f32 %v292, %v304
      %v309 = vpack.c.bf16 %v307, %v307
      %v310 = vpack.c.bf16 %v308, %v308
      %v313 = vunpack.c.l.b16 %v309
      %v314 = vunpack.c.l.b16 %v310
      %v315 = vpack.c.b16 %v314, %v313
      %317 = vst [vmem:[#allocation2 + $0x8] sm:$0xff] %v315
      %318 = vrot.lane.b32.xlu0 %v253, 71
      %v319 = vpop.permute.xlu0 %318
      %320 = vrot.lane.b32.xlu0 %v254, 71
      %v321 = vpop.permute.xlu0 %320
      %vm322 = vcmp.lt.s32.totalorder %v260, 71
      %v323 = vsel %vm322, %v319, %v321
      %v324 = vsel %vm322, %v321, %v319
      %s325 = scalar_lea.vmem %s0, 2
      %v326 = vld [vmem:[%s325] ss:$8 sm:$0x3]
      %v328 = vlaneseq
      %v329 = vshrl.u32 %v328, 7
      %v330 = vsub.s32 0, %v329
      %v331 = vrot.slane %v326, %v330
      %v332 = vlaneseq
      %v333 = vshrl.u32 %v332, 7
      %v334 = vsub.s32 1, %v333
      %v335 = vrot.slane %v326, %v334
      %v338 = vmul.f32 %v324, %v331
      %v339 = vmul.f32 %v323, %v335
      %v340 = vpack.c.bf16 %v338, %v338
      %v341 = vpack.c.bf16 %v339, %v339
      %v344 = vunpack.c.l.b16 %v340
      %v345 = vunpack.c.l.b16 %v341
      %v346 = vpack.c.b16 %v345, %v344
      %348 = vst [vmem:[#allocation2 + $0x10] sm:$0xff] %v346
      %349 = vrot.lane.b32.xlu0 %v253, 65
      %v350 = vpop.permute.xlu0 %349
      %351 = vrot.lane.b32.xlu0 %v254, 65
      %v352 = vpop.permute.xlu0 %351
      %vm353 = vcmp.lt.s32.totalorder %v260, 65
      %v354 = vsel %vm353, %v350, %v352
      %v355 = vsel %vm353, %v352, %v350
      %s356 = scalar_lea.vmem %s0, 3
      %v357 = vld [vmem:[%s356] ss:$8 sm:$0x3]
      %v359 = vlaneseq
      %v360 = vshrl.u32 %v359, 7
      %v361 = vsub.s32 0, %v360
      %v362 = vrot.slane %v357, %v361
      %v363 = vlaneseq
      %v364 = vshrl.u32 %v363, 7
      %v365 = vsub.s32 1, %v364
      %v366 = vrot.slane %v357, %v365
      %v369 = vmul.f32 %v355, %v362
      %v370 = vmul.f32 %v354, %v366
      %v371 = vpack.c.bf16 %v369, %v369
      %v372 = vpack.c.bf16 %v370, %v370
      %v375 = vunpack.c.l.b16 %v371
      %v376 = vunpack.c.l.b16 %v372
      %v377 = vpack.c.b16 %v376, %v375
      %379 = vst [vmem:[#allocation2 + $0x18] sm:$0xff] %v377
      %380 = vrot.lane.b32.xlu0 %v253, 64
      %v381 = vpop.permute.xlu0 %380
      %382 = vrot.lane.b32.xlu0 %v254, 64
      %v383 = vpop.permute.xlu0 %382
      %vm384 = vcmp.lt.s32.totalorder %v260, 64
      %v385 = vsel %vm384, %v381, %v383
      %v386 = vsel %vm384, %v383, %v381
      %s387 = scalar_lea.vmem %s0, 4
      %v388 = vld [vmem:[%s387] ss:$8 sm:$0x3]
      %v390 = vlaneseq
      %v391 = vshrl.u32 %v390, 7
      %v392 = vsub.s32 0, %v391
      %v393 = vrot.slane %v388, %v392
      %v394 = vlaneseq
      %v395 = vshrl.u32 %v394, 7
      %v396 = vsub.s32 1, %v395
      %v397 = vrot.slane %v388, %v396
      %v400 = vmul.f32 %v386, %v393
      %v401 = vmul.f32 %v385, %v397
      %v402 = vpack.c.bf16 %v400, %v400
      %v403 = vpack.c.bf16 %v401, %v401
      %v406 = vunpack.c.l.b16 %v402
      %v407 = vunpack.c.l.b16 %v403
      %v408 = vpack.c.b16 %v407, %v406
      %410 = vst [vmem:[#allocation2 + $0x20] sm:$0xff] %v408
      %411 = vrot.lane.b32.xlu0 %v253, 63
      %v412 = vpop.permute.xlu0 %411
      %413 = vrot.lane.b32.xlu0 %v254, 63
      %v414 = vpop.permute.xlu0 %413
      %vm415 = vcmp.lt.s32.totalorder %v260, 63
      %v416 = vsel %vm415, %v412, %v414
      %v417 = vsel %vm415, %v414, %v412
      %s418 = scalar_lea.vmem %s0, 5
      %v419 = vld [vmem:[%s418] ss:$8 sm:$0x3]
      %v421 = vlaneseq
      %v422 = vshrl.u32 %v421, 7
      %v423 = vsub.s32 0, %v422
      %v424 = vrot.slane %v419, %v423
      %v425 = vlaneseq
      %v426 = vshrl.u32 %v425, 7
      %v427 = vsub.s32 1, %v426
      %v428 = vrot.slane %v419, %v427
      %v431 = vmul.f32 %v417, %v424
      %v432 = vmul.f32 %v416, %v428
      %v433 = vpack.c.bf16 %v431, %v431
      %v434 = vpack.c.bf16 %v432, %v432
      %v437 = vunpack.c.l.b16 %v433
      %v438 = vunpack.c.l.b16 %v434
      %v439 = vpack.c.b16 %v438, %v437
      %441 = vst [vmem:[#allocation2 + $0x28] sm:$0xff] %v439
      %442 = vrot.lane.b32.xlu0 %v253, 57
      %v443 = vpop.permute.xlu0 %442
      %444 = vrot.lane.b32.xlu0 %v254, 57
      %v445 = vpop.permute.xlu0 %444
      %vm446 = vcmp.lt.s32.totalorder %v260, 57
      %v447 = vsel %vm446, %v443, %v445
      %v448 = vsel %vm446, %v445, %v443
      %s449 = scalar_lea.vmem %s0, 6
      %v450 = vld [vmem:[%s449] ss:$8 sm:$0x3]
      %v452 = vlaneseq
      %v453 = vshrl.u32 %v452, 7
      %v454 = vsub.s32 0, %v453
      %v455 = vrot.slane %v450, %v454
      %v456 = vlaneseq
      %v457 = vshrl.u32 %v456, 7
      %v458 = vsub.s32 1, %v457
      %v459 = vrot.slane %v450, %v458
      %v462 = vmul.f32 %v448, %v455
      %v463 = vmul.f32 %v447, %v459
      %v464 = vpack.c.bf16 %v462, %v462
      %v465 = vpack.c.bf16 %v463, %v463
      %v468 = vunpack.c.l.b16 %v464
      %v469 = vunpack.c.l.b16 %v465
      %v470 = vpack.c.b16 %v469, %v468
      %472 = vst [vmem:[#allocation2 + $0x30] sm:$0xff] %v470
      %473 = vrot.lane.b32.xlu0 %v253, 56
      %v474 = vpop.permute.xlu0 %473
      %475 = vrot.lane.b32.xlu0 %v254, 56
      %v476 = vpop.permute.xlu0 %475
      %vm477 = vcmp.lt.s32.totalorder %v260, 56
      %v478 = vsel %vm477, %v474, %v476
      %v479 = vsel %vm477, %v476, %v474
      %s480 = scalar_lea.vmem %s0, 7
      %v481 = vld [vmem:[%s480] ss:$8 sm:$0x3]
      %v483 = vlaneseq
      %v484 = vshrl.u32 %v483, 7
      %v485 = vsub.s32 0, %v484
      %v486 = vrot.slane %v481, %v485
      %v487 = vlaneseq
      %v488 = vshrl.u32 %v487, 7
      %v489 = vsub.s32 1, %v488
      %v490 = vrot.slane %v481, %v489
      %v493 = vmul.f32 %v479, %v486
      %v494 = vmul.f32 %v478, %v490
      %v495 = vpack.c.bf16 %v493, %v493
      %v496 = vpack.c.bf16 %v494, %v494
      %v499 = vunpack.c.l.b16 %v495
      %v500 = vunpack.c.l.b16 %v496
      %v501 = vpack.c.b16 %v500, %v499
      %503 = vst [vmem:[#allocation2 + $0x38] sm:$0xff] %v501
      %504 = vrot.lane.b32.xlu0 %v253, 55
      %v505 = vpop.permute.xlu0 %504
      %506 = vrot.lane.b32.xlu0 %v254, 55
      %v507 = vpop.permute.xlu0 %506
      %vm508 = vcmp.lt.s32.totalorder %v260, 55
      %v509 = vsel %vm508, %v505, %v507
      %v510 = vsel %vm508, %v507, %v505
      %s511 = scalar_lea.vmem %s0, 16
      %v512 = vld [vmem:[%s511] ss:$8 sm:$0x3]
      %v514 = vlaneseq
      %v515 = vshrl.u32 %v514, 7
      %v516 = vsub.s32 0, %v515
      %v517 = vrot.slane %v512, %v516
      %v518 = vlaneseq
      %v519 = vshrl.u32 %v518, 7
      %v520 = vsub.s32 1, %v519
      %v521 = vrot.slane %v512, %v520
      %v524 = vmul.f32 %v510, %v517
      %v525 = vmul.f32 %v509, %v521
      %v526 = vpack.c.bf16 %v524, %v524
      %v527 = vpack.c.bf16 %v525, %v525
      %v530 = vunpack.c.l.b16 %v526
      %v531 = vunpack.c.l.b16 %v527
      %v532 = vpack.c.b16 %v531, %v530
      %534 = vst [vmem:[#allocation2 + $0x40] sm:$0xff] %v532
      %535 = vrot.lane.b32.xlu0 %v253, 9
      %v536 = vpop.permute.xlu0 %535
      %537 = vrot.lane.b32.xlu0 %v254, 9
      %v538 = vpop.permute.xlu0 %537
      %vm539 = vcmp.lt.s32.totalorder %v260, 9
      %v540 = vsel %vm539, %v536, %v538
      %v541 = vsel %vm539, %v538, %v536
      %s542 = scalar_lea.vmem %s0, 17
      %v543 = vld [vmem:[%s542] ss:$8 sm:$0x3]
      %v545 = vlaneseq
      %v546 = vshrl.u32 %v545, 7
      %v547 = vsub.s32 0, %v546
      %v548 = vrot.slane %v543, %v547
      %v549 = vlaneseq
      %v550 = vshrl.u32 %v549, 7
      %v551 = vsub.s32 1, %v550
      %v552 = vrot.slane %v543, %v551
      %v555 = vmul.f32 %v541, %v548
      %v556 = vmul.f32 %v540, %v552
      %v557 = vpack.c.bf16 %v555, %v555
      %v558 = vpack.c.bf16 %v556, %v556
      %v561 = vunpack.c.l.b16 %v557
      %v562 = vunpack.c.l.b16 %v558
      %v563 = vpack.c.b16 %v562, %v561
      %565 = vst [vmem:[#allocation2 + $0x48] sm:$0xff] %v563
      %566 = vrot.lane.b32.xlu0 %v253, 8
      %v567 = vpop.permute.xlu0 %566
      %568 = vrot.lane.b32.xlu0 %v254, 8
      %v569 = vpop.permute.xlu0 %568
      %vm570 = vcmp.lt.s32.totalorder %v260, 8
      %v571 = vsel %vm570, %v567, %v569
      %v572 = vsel %vm570, %v569, %v567
      %s573 = scalar_lea.vmem %s0, 18
      %v574 = vld [vmem:[%s573] ss:$8 sm:$0x3]
      %v576 = vlaneseq
      %v577 = vshrl.u32 %v576, 7
      %v578 = vsub.s32 0, %v577
      %v579 = vrot.slane %v574, %v578
      %v580 = vlaneseq
      %v581 = vshrl.u32 %v580, 7
      %v582 = vsub.s32 1, %v581
      %v583 = vrot.slane %v574, %v582
      %v586 = vmul.f32 %v572, %v579
      %v587 = vmul.f32 %v571, %v583
      %v588 = vpack.c.bf16 %v586, %v586
      %v589 = vpack.c.bf16 %v587, %v587
      %v592 = vunpack.c.l.b16 %v588
      %v593 = vunpack.c.l.b16 %v589
      %v594 = vpack.c.b16 %v593, %v592
      %596 = vst [vmem:[#allocation2 + $0x50] sm:$0xff] %v594
      %597 = vrot.lane.b32.xlu0 %v253, 7
      %v598 = vpop.permute.xlu0 %597
      %599 = vrot.lane.b32.xlu0 %v254, 7
      %v600 = vpop.permute.xlu0 %599
      %vm601 = vcmp.lt.s32.totalorder %v260, 7
      %v602 = vsel %vm601, %v598, %v600
      %v603 = vsel %vm601, %v600, %v598
      %s604 = scalar_lea.vmem %s0, 19
      %v605 = vld [vmem:[%s604] ss:$8 sm:$0x3]
      %v607 = vlaneseq
      %v608 = vshrl.u32 %v607, 7
      %v609 = vsub.s32 0, %v608
      %v610 = vrot.slane %v605, %v609
      %v611 = vlaneseq
      %v612 = vshrl.u32 %v611, 7
      %v613 = vsub.s32 1, %v612
      %v614 = vrot.slane %v605, %v613
      %v617 = vmul.f32 %v603, %v610
      %v618 = vmul.f32 %v602, %v614
      %v619 = vpack.c.bf16 %v617, %v617
      %v620 = vpack.c.bf16 %v618, %v618
      %v623 = vunpack.c.l.b16 %v619
      %v624 = vunpack.c.l.b16 %v620
      %v625 = vpack.c.b16 %v624, %v623
      %627 = vst [vmem:[#allocation2 + $0x58] sm:$0xff] %v625
      %628 = vrot.lane.b32.xlu0 %v253, 1
      %v629 = vpop.permute.xlu0 %628
      %630 = vrot.lane.b32.xlu0 %v254, 1
      %v631 = vpop.permute.xlu0 %630
      %vm632 = vcmp.lt.s32.totalorder %v260, 1
      %v633 = vsel %vm632, %v629, %v631
      %v634 = vsel %vm632, %v631, %v629
      %s635 = scalar_lea.vmem %s0, 20
      %v636 = vld [vmem:[%s635] ss:$8 sm:$0x3]
      %v638 = vlaneseq
      %v639 = vshrl.u32 %v638, 7
      %v640 = vsub.s32 0, %v639
      %v641 = vrot.slane %v636, %v640
      %v642 = vlaneseq
      %v643 = vshrl.u32 %v642, 7
      %v644 = vsub.s32 1, %v643
      %v645 = vrot.slane %v636, %v644
      %v648 = vmul.f32 %v634, %v641
      %v649 = vmul.f32 %v633, %v645
      %v650 = vpack.c.bf16 %v648, %v648
      %v651 = vpack.c.bf16 %v649, %v649
      %v654 = vunpack.c.l.b16 %v650
      %v655 = vunpack.c.l.b16 %v651
      %v656 = vpack.c.b16 %v655, %v654
      %658 = vst [vmem:[#allocation2 + $0x60] sm:$0xff] %v656
      %v659 = vpack.c.bf16 %v253, %v253
      %v660 = vpack.c.bf16 %v254, %v254
      %v663 = vunpack.c.l.b16 %v659
      %v664 = vunpack.c.l.b16 %v660
      %v665 = vpack.c.b16 %v664, %v663
      %667 = vst [vmem:[#allocation2 + $0x68] sm:$0xff] %v665
      %668 = vrot.lane.b32.xlu0 %v253, 127
      %v669 = vpop.permute.xlu0 %668
      %670 = vrot.lane.b32.xlu0 %v254, 127
      %v671 = vpop.permute.xlu0 %670
      %vm672 = vcmp.lt.s32.totalorder %v260, 127
      %v673 = vsel %vm672, %v669, %v671
      %v674 = vsel %vm672, %v671, %v669
      %s675 = scalar_lea.vmem %s0, 22
      %v676 = vld [vmem:[%s675] ss:$8 sm:$0x3]
      %v678 = vlaneseq
      %v679 = vshrl.u32 %v678, 7
      %v680 = vsub.s32 0, %v679
      %v681 = vrot.slane %v676, %v680
      %v682 = vlaneseq
      %v683 = vshrl.u32 %v682, 7
      %v684 = vsub.s32 1, %v683
      %v685 = vrot.slane %v676, %v684
      %v688 = vmul.f32 %v673, %v681
      %v689 = vmul.f32 %v674, %v685
      %v690 = vpack.c.bf16 %v688, %v688
      %v691 = vpack.c.bf16 %v689, %v689
      %v694 = vunpack.c.l.b16 %v690
      %v695 = vunpack.c.l.b16 %v691
      %v696 = vpack.c.b16 %v695, %v694
      %698 = vst [vmem:[#allocation2 + $0x70] sm:$0xff] %v696
      %699 = vrot.lane.b32.xlu0 %v253, 121
      %v700 = vpop.permute.xlu0 %699
      %701 = vrot.lane.b32.xlu0 %v254, 121
      %v702 = vpop.permute.xlu0 %701
      %vm703 = vcmp.lt.s32.totalorder %v260, 121
      %v704 = vsel %vm703, %v700, %v702
      %v705 = vsel %vm703, %v702, %v700
      %s706 = scalar_lea.vmem %s0, 23
      %v707 = vld [vmem:[%s706] ss:$8 sm:$0x3]
      %v709 = vlaneseq
      %v710 = vshrl.u32 %v709, 7
      %v711 = vsub.s32 0, %v710
      %v712 = vrot.slane %v707, %v711
      %v713 = vlaneseq
      %v714 = vshrl.u32 %v713, 7
      %v715 = vsub.s32 1, %v714
      %v716 = vrot.slane %v707, %v715
      %v719 = vmul.f32 %v704, %v712
      %v720 = vmul.f32 %v705, %v716
      %v721 = vpack.c.bf16 %v719, %v719
      %v722 = vpack.c.bf16 %v720, %v720
      %v725 = vunpack.c.l.b16 %v721
      %v726 = vunpack.c.l.b16 %v722
      %v727 = vpack.c.b16 %v726, %v725
      %729 = vst [vmem:[#allocation2 + $0x78] sm:$0xff] %v727
      %730 = vrot.lane.b32.xlu0 %v253, 120
      %v731 = vpop.permute.xlu0 %730
      %732 = vrot.lane.b32.xlu0 %v254, 120
      %v733 = vpop.permute.xlu0 %732
      %vm734 = vcmp.lt.s32.totalorder %v260, 120
      %v735 = vsel %vm734, %v731, %v733
      %v736 = vsel %vm734, %v733, %v731
      %s737 = scalar_lea.vmem %s0, 32
      %v738 = vld [vmem:[%s737] ss:$8 sm:$0x3]
      %v740 = vlaneseq
      %v741 = vshrl.u32 %v740, 7
      %v742 = vsub.s32 0, %v741
      %v743 = vrot.slane %v738, %v742
      %v744 = vlaneseq
      %v745 = vshrl.u32 %v744, 7
      %v746 = vsub.s32 1, %v745
      %v747 = vrot.slane %v738, %v746
      %v750 = vmul.f32 %v735, %v743
      %v751 = vmul.f32 %v736, %v747
      %v752 = vpack.c.bf16 %v750, %v750
      %v753 = vpack.c.bf16 %v751, %v751
      %v756 = vunpack.c.l.b16 %v752
      %v757 = vunpack.c.l.b16 %v753
      %v758 = vpack.c.b16 %v757, %v756
      %760 = vst [vmem:[#allocation2 + $0x80] sm:$0xff] %v758
      %761 = vrot.lane.b32.xlu0 %v253, 119
      %v762 = vpop.permute.xlu0 %761
      %763 = vrot.lane.b32.xlu0 %v254, 119
      %v764 = vpop.permute.xlu0 %763
      %vm765 = vcmp.lt.s32.totalorder %v260, 119
      %v766 = vsel %vm765, %v762, %v764
      %v767 = vsel %vm765, %v764, %v762
      %s768 = scalar_lea.vmem %s0, 33
      %v769 = vld [vmem:[%s768] ss:$8 sm:$0x3]
      %v771 = vlaneseq
      %v772 = vshrl.u32 %v771, 7
      %v773 = vsub.s32 0, %v772
      %v774 = vrot.slane %v769, %v773
      %v775 = vlaneseq
      %v776 = vshrl.u32 %v775, 7
      %v777 = vsub.s32 1, %v776
      %v778 = vrot.slane %v769, %v777
      %v781 = vmul.f32 %v766, %v774
      %v782 = vmul.f32 %v767, %v778
      %v783 = vpack.c.bf16 %v781, %v781
      %v784 = vpack.c.bf16 %v782, %v782
      %v787 = vunpack.c.l.b16 %v783
      %v788 = vunpack.c.l.b16 %v784
      %v789 = vpack.c.b16 %v788, %v787
      %791 = vst [vmem:[#allocation2 + $0x88] sm:$0xff] %v789
      %s792 = scalar_lea.vmem %s0, 34
      %v793 = vld [vmem:[%s792] ss:$8 sm:$0x3]
      %v795 = vlaneseq
      %v796 = vshrl.u32 %v795, 7
      %v797 = vsub.s32 0, %v796
      %v798 = vrot.slane %v793, %v797
      %v799 = vlaneseq
      %v800 = vshrl.u32 %v799, 7
      %v801 = vsub.s32 1, %v800
      %v802 = vrot.slane %v793, %v801
      %v805 = vmul.f32 %v262, %v798
      %v806 = vmul.f32 %v263, %v802
      %v807 = vpack.c.bf16 %v805, %v805
      %v808 = vpack.c.bf16 %v806, %v806
      %v811 = vunpack.c.l.b16 %v807
      %v812 = vunpack.c.l.b16 %v808
      %v813 = vpack.c.b16 %v812, %v811
      %815 = vst [vmem:[#allocation2 + $0x90] sm:$0xff] %v813
      %s816 = scalar_lea.vmem %s0, 35
      %v817 = vld [vmem:[%s816] ss:$8 sm:$0x3]
      %v819 = vlaneseq
      %v820 = vshrl.u32 %v819, 7
      %v821 = vsub.s32 0, %v820
      %v822 = vrot.slane %v817, %v821
      %v823 = vlaneseq
      %v824 = vshrl.u32 %v823, 7
      %v825 = vsub.s32 1, %v824
      %v826 = vrot.slane %v817, %v825
      %v829 = vmul.f32 %v292, %v822
      %v830 = vmul.f32 %v293, %v826
      %v831 = vpack.c.bf16 %v829, %v829
      %v832 = vpack.c.bf16 %v830, %v830
      %v835 = vunpack.c.l.b16 %v831
      %v836 = vunpack.c.l.b16 %v832
      %v837 = vpack.c.b16 %v836, %v835
      %839 = vst [vmem:[#allocation2 + $0x98] sm:$0xff] %v837
      %s840 = scalar_lea.vmem %s0, 36
      %v841 = vld [vmem:[%s840] ss:$8 sm:$0x3]
      %v843 = vlaneseq
      %v844 = vshrl.u32 %v843, 7
      %v845 = vsub.s32 0, %v844
      %v846 = vrot.slane %v841, %v845
      %v847 = vlaneseq
      %v848 = vshrl.u32 %v847, 7
      %v849 = vsub.s32 1, %v848
      %v850 = vrot.slane %v841, %v849
      %v853 = vmul.f32 %v323, %v846
      %v854 = vmul.f32 %v324, %v850
      %v855 = vpack.c.bf16 %v853, %v853
      %v856 = vpack.c.bf16 %v854, %v854
      %v859 = vunpack.c.l.b16 %v855
      %v860 = vunpack.c.l.b16 %v856
      %v861 = vpack.c.b16 %v860, %v859
      %863 = vst [vmem:[#allocation2 + $0xa0] sm:$0xff] %v861
      %s864 = scalar_lea.vmem %s0, 37
      %v865 = vld [vmem:[%s864] ss:$8 sm:$0x3]
      %v867 = vlaneseq
      %v868 = vshrl.u32 %v867, 7
      %v869 = vsub.s32 0, %v868
      %v870 = vrot.slane %v865, %v869
      %v871 = vlaneseq
      %v872 = vshrl.u32 %v871, 7
      %v873 = vsub.s32 1, %v872
      %v874 = vrot.slane %v865, %v873
      %v877 = vmul.f32 %v354, %v870
      %v878 = vmul.f32 %v355, %v874
      %v879 = vpack.c.bf16 %v877, %v877
      %v880 = vpack.c.bf16 %v878, %v878
      %v883 = vunpack.c.l.b16 %v879
      %v884 = vunpack.c.l.b16 %v880
      %v885 = vpack.c.b16 %v884, %v883
      %887 = vst [vmem:[#allocation2 + $0xa8] sm:$0xff] %v885
      %s888 = scalar_lea.vmem %s0, 38
      %v889 = vld [vmem:[%s888] ss:$8 sm:$0x3]
      %v891 = vlaneseq
      %v892 = vshrl.u32 %v891, 7
      %v893 = vsub.s32 0, %v892
      %v894 = vrot.slane %v889, %v893
      %v895 = vlaneseq
      %v896 = vshrl.u32 %v895, 7
      %v897 = vsub.s32 1, %v896
      %v898 = vrot.slane %v889, %v897
      %v901 = vmul.f32 %v385, %v894
      %v902 = vmul.f32 %v386, %v898
      %v903 = vpack.c.bf16 %v901, %v901
      %v904 = vpack.c.bf16 %v902, %v902
      %v907 = vunpack.c.l.b16 %v903
      %v908 = vunpack.c.l.b16 %v904
      %v909 = vpack.c.b16 %v908, %v907
      %911 = vst [vmem:[#allocation2 + $0xb0] sm:$0xff] %v909
      %s912 = scalar_lea.vmem %s0, 39
      %v913 = vld [vmem:[%s912] ss:$8 sm:$0x3]
      %v915 = vlaneseq
      %v916 = vshrl.u32 %v915, 7
      %v917 = vsub.s32 0, %v916
      %v918 = vrot.slane %v913, %v917
      %v919 = vlaneseq
      %v920 = vshrl.u32 %v919, 7
      %v921 = vsub.s32 1, %v920
      %v922 = vrot.slane %v913, %v921
      %v925 = vmul.f32 %v416, %v918
      %v926 = vmul.f32 %v417, %v922
      %v927 = vpack.c.bf16 %v925, %v925
      %v928 = vpack.c.bf16 %v926, %v926
      %v931 = vunpack.c.l.b16 %v927
      %v932 = vunpack.c.l.b16 %v928
      %v933 = vpack.c.b16 %v932, %v931
      %935 = vst [vmem:[#allocation2 + $0xb8] sm:$0xff] %v933
      %s936 = scalar_lea.vmem %s0, 48
      %v937 = vld [vmem:[%s936] ss:$8 sm:$0x3]
      %v939 = vlaneseq
      %v940 = vshrl.u32 %v939, 7
      %v941 = vsub.s32 0, %v940
      %v942 = vrot.slane %v937, %v941
      %v943 = vlaneseq
      %v944 = vshrl.u32 %v943, 7
      %v945 = vsub.s32 1, %v944
      %v946 = vrot.slane %v937, %v945
      %v949 = vmul.f32 %v447, %v942
      %v950 = vmul.f32 %v448, %v946
      %v951 = vpack.c.bf16 %v949, %v949
      %v952 = vpack.c.bf16 %v950, %v950
      %v955 = vunpack.c.l.b16 %v951
      %v956 = vunpack.c.l.b16 %v952
      %v957 = vpack.c.b16 %v956, %v955
      %959 = vst [vmem:[#allocation2 + $0xc0] sm:$0xff] %v957
      %s960 = scalar_lea.vmem %s0, 49
      %v961 = vld [vmem:[%s960] ss:$8 sm:$0x3]
      %v963 = vlaneseq
      %v964 = vshrl.u32 %v963, 7
      %v965 = vsub.s32 0, %v964
      %v966 = vrot.slane %v961, %v965
      %v967 = vlaneseq
      %v968 = vshrl.u32 %v967, 7
      %v969 = vsub.s32 1, %v968
      %v970 = vrot.slane %v961, %v969
      %v973 = vmul.f32 %v478, %v966
      %v974 = vmul.f32 %v479, %v970
      %v975 = vpack.c.bf16 %v973, %v973
      %v976 = vpack.c.bf16 %v974, %v974
      %v979 = vunpack.c.l.b16 %v975
      %v980 = vunpack.c.l.b16 %v976
      %v981 = vpack.c.b16 %v980, %v979
      %983 = vst [vmem:[#allocation2 + $0xc8] sm:$0xff] %v981
      %s984 = scalar_lea.vmem %s0, 50
      %v985 = vld [vmem:[%s984] ss:$8 sm:$0x3]
      %v987 = vlaneseq
      %v988 = vshrl.u32 %v987, 7
      %v989 = vsub.s32 0, %v988
      %v990 = vrot.slane %v985, %v989
      %v991 = vlaneseq
      %v992 = vshrl.u32 %v991, 7
      %v993 = vsub.s32 1, %v992
      %v994 = vrot.slane %v985, %v993
      %v997 = vmul.f32 %v509, %v990
      %v998 = vmul.f32 %v510, %v994
      %v999 = vpack.c.bf16 %v997, %v997
      %v1000 = vpack.c.bf16 %v998, %v998
      %v1003 = vunpack.c.l.b16 %v999
      %v1004 = vunpack.c.l.b16 %v1000
      %v1005 = vpack.c.b16 %v1004, %v1003
      %1007 = vst [vmem:[#allocation2 + $0xd0] sm:$0xff] %v1005
      %v1008 = vld [vmem:[%s2] sm:$0xff]
      %v1009 = vld [vmem:[#allocation2] sm:$0xff]
      %v1010 = vld [vmem:[#allocation2 + $0x8] sm:$0xff]
      %v1011 = vld [vmem:[#allocation2 + $0x10] sm:$0xff]
      %v1012 = vld [vmem:[#allocation2 + $0x18] sm:$0xff]
      %v1013 = vld [vmem:[#allocation2 + $0x20] sm:$0xff]
      %v1014 = vld [vmem:[#allocation2 + $0x28] sm:$0xff]
      %v1015 = vld [vmem:[#allocation2 + $0x30] sm:$0xff]
      %v1016 = vld [vmem:[#allocation2 + $0x38] sm:$0xff]
      %v1017 = vld [vmem:[#allocation2 + $0x40] sm:$0xff]
      %v1018 = vld [vmem:[#allocation2 + $0x48] sm:$0xff]
      %v1019 = vld [vmem:[#allocation2 + $0x50] sm:$0xff]
      %v1020 = vld [vmem:[#allocation2 + $0x58] sm:$0xff]
      %v1021 = vld [vmem:[#allocation2 + $0x60] sm:$0xff]
      %v1022 = vld [vmem:[#allocation2 + $0x68] sm:$0xff]
      %v1023 = vld [vmem:[#allocation2 + $0x70] sm:$0xff]
      %v1024 = vld [vmem:[#allocation2 + $0x78] sm:$0xff]
      %v1025 = vld [vmem:[#allocation2 + $0x80] sm:$0xff]
      %v1026 = vld [vmem:[#allocation2 + $0x88] sm:$0xff]
      %v1027 = vld [vmem:[#allocation2 + $0x90] sm:$0xff]
      %v1028 = vld [vmem:[#allocation2 + $0x98] sm:$0xff]
      %v1029 = vld [vmem:[#allocation2 + $0xa0] sm:$0xff]
      %v1030 = vld [vmem:[#allocation2 + $0xa8] sm:$0xff]
      %v1031 = vld [vmem:[#allocation2 + $0xb0] sm:$0xff]
      %v1032 = vld [vmem:[#allocation2 + $0xb8] sm:$0xff]
      %v1033 = vld [vmem:[#allocation2 + $0xc0] sm:$0xff]
      %v1034 = vld [vmem:[#allocation2 + $0xc8] sm:$0xff]
      %v1035 = vld [vmem:[#allocation2 + $0xd0] sm:$0xff]
      %v1036 = vld [vmem:[%s3] sm:$0xff]
      %1038 = vset.pattern.permute.xlu0 0
      %1039 = vperm.xlu0 %1038, %v1036
      %v1040 = vpop.permute.xlu0 %1039
      %v1043 = vunpack.c.l.b16 %v1008
      %v1044 = vunpack.c.h.b16 %v1008
      %v1045 = vpack.c.b16 %v1043, %v1043
      %v1046 = vpack.c.b16 %v1044, %v1044
      %v1075 = vunpack.c.l.b16 %v1009
      %v1076 = vunpack.c.h.b16 %v1009
      %v1077 = vunpack.c.l.b16 %v1010
      %v1078 = vunpack.c.h.b16 %v1010
      %v1079 = vunpack.c.l.b16 %v1011
      %v1080 = vunpack.c.h.b16 %v1011
      %v1081 = vunpack.c.l.b16 %v1012
      %v1082 = vunpack.c.h.b16 %v1012
      %v1083 = vunpack.c.l.b16 %v1013
      %v1084 = vunpack.c.h.b16 %v1013
      %v1085 = vunpack.c.l.b16 %v1014
      %v1086 = vunpack.c.h.b16 %v1014
      %v1087 = vunpack.c.l.b16 %v1015
      %v1088 = vunpack.c.h.b16 %v1015
      %v1089 = vunpack.c.l.b16 %v1016
      %v1090 = vunpack.c.h.b16 %v1016
      %v1091 = vunpack.c.l.b16 %v1017
      %v1092 = vunpack.c.h.b16 %v1017
      %v1093 = vunpack.c.l.b16 %v1018
      %v1094 = vunpack.c.h.b16 %v1018
      %v1095 = vunpack.c.l.b16 %v1019
      %v1096 = vunpack.c.h.b16 %v1019
      %v1097 = vunpack.c.l.b16 %v1020
      %v1098 = vunpack.c.h.b16 %v1020
      %v1099 = vunpack.c.l.b16 %v1021
      %v1100 = vunpack.c.h.b16 %v1021
      %v1101 = vunpack.c.l.b16 %v1022
      %v1102 = vunpack.c.h.b16 %v1022
      %v1103 = vunpack.c.l.b16 %v1023
      %v1104 = vunpack.c.h.b16 %v1023
      %v1105 = vunpack.c.l.b16 %v1024
      %v1106 = vunpack.c.h.b16 %v1024
      %v1107 = vunpack.c.l.b16 %v1025
      %v1108 = vunpack.c.h.b16 %v1025
      %v1109 = vunpack.c.l.b16 %v1026
      %v1110 = vunpack.c.h.b16 %v1026
      %v1111 = vunpack.c.l.b16 %v1027
      %v1112 = vunpack.c.h.b16 %v1027
      %v1113 = vunpack.c.l.b16 %v1028
      %v1114 = vunpack.c.h.b16 %v1028
      %v1115 = vunpack.c.l.b16 %v1029
      %v1116 = vunpack.c.h.b16 %v1029
      %v1117 = vunpack.c.l.b16 %v1030
      %v1118 = vunpack.c.h.b16 %v1030
      %v1119 = vunpack.c.l.b16 %v1031
      %v1120 = vunpack.c.h.b16 %v1031
      %v1121 = vunpack.c.l.b16 %v1032
      %v1122 = vunpack.c.h.b16 %v1032
      %v1123 = vunpack.c.l.b16 %v1033
      %v1124 = vunpack.c.h.b16 %v1033
      %v1125 = vunpack.c.l.b16 %v1034
      %v1126 = vunpack.c.h.b16 %v1034
      %v1127 = vunpack.c.l.b16 %v1035
      %v1128 = vunpack.c.h.b16 %v1035
      %v1129 = vpack.c.b16 %v1077, %v1075
      %v1130 = vpack.c.b16 %v1078, %v1076
      %v1131 = vpack.c.b16 %v1081, %v1079
      %v1132 = vpack.c.b16 %v1082, %v1080
      %v1133 = vpack.c.b16 %v1085, %v1083
      %v1134 = vpack.c.b16 %v1086, %v1084
      %v1135 = vpack.c.b16 %v1089, %v1087
      %v1136 = vpack.c.b16 %v1090, %v1088
      %v1137 = vpack.c.b16 %v1093, %v1091
      %v1138 = vpack.c.b16 %v1094, %v1092
      %v1139 = vpack.c.b16 %v1097, %v1095
      %v1140 = vpack.c.b16 %v1098, %v1096
      %v1141 = vpack.c.b16 %v1101, %v1099
      %v1142 = vpack.c.b16 %v1102, %v1100
      %v1143 = vpack.c.b16 %v1105, %v1103
      %v1144 = vpack.c.b16 %v1106, %v1104
      %v1145 = vpack.c.b16 %v1109, %v1107
      %v1146 = vpack.c.b16 %v1110, %v1108
      %v1147 = vpack.c.b16 %v1113, %v1111
      %v1148 = vpack.c.b16 %v1114, %v1112
      %v1149 = vpack.c.b16 %v1117, %v1115
      %v1150 = vpack.c.b16 %v1118, %v1116
      %v1151 = vpack.c.b16 %v1121, %v1119
      %v1152 = vpack.c.b16 %v1122, %v1120
      %v1153 = vpack.c.b16 %v1125, %v1123
      %v1154 = vpack.c.b16 %v1126, %v1124
      %v1155 = vpack.c.b16 %v1127, %v1127
      %v1156 = vpack.c.b16 %v1128, %v1128
      %vm1183 = vcmask 719872
      %v1185 = vsel %vm1183, %v1046, 0
      %vm1187 = vcmask 1043456
      %v1189 = vsel %vm1187, %v1155, 0
      %v1192 = vsel %vm1187, %v1156, 0
      %1194 = vmatprep.subr.bf16.mxu0 %v1144
      %1195 = vmatpush1.bf16.msra.mxu0 %v1143
      %1196 = vmatprep.subr.bf16.mxu0 %v1142
      %1197 = vmatpush1.bf16.msra.mxu0 %v1141
      %1198 = vmatprep.subr.bf16.mxu0 %v1140
      %1199 = vmatpush1.bf16.msra.mxu0 %v1139
      %1200 = vmatprep.subr.bf16.mxu0 %v1138
      %1201 = vmatpush1.bf16.msra.mxu0 %v1137
      %1202 = vmatprep.subr.bf16.mxu0 %v1136
      %1203 = vmatpush1.bf16.msra.mxu0 %v1135
      %1204 = vmatprep.subr.bf16.mxu0 %v1134
      %1205 = vmatpush1.bf16.msra.mxu0 %v1133
      %1206 = vmatprep.subr.bf16.mxu0 %v1132
      %1207 = vmatpush1.bf16.msra.mxu0 %v1131
      %1208 = vmatprep.subr.bf16.mxu0 %v1130
      %1209 = vmatpush1.bf16.msra.mxu0 %v1129
      %1210 = vmatprep.subr.bf16.mxu0 0
      %1211 = vmatpush2.bf16.msra.mxu0 0
      %1212 = vmatprep.subr.bf16.mxu0 0
      %1213 = vmatpush2.bf16.msra.mxu0 0
      %1214 = vmatprep.subr.bf16.mxu0 %v1192
      %1215 = vmatpush2.bf16.msra.mxu0 %v1189
      %1216 = vmatprep.subr.bf16.mxu0 %v1154
      %1217 = vmatpush2.bf16.msra.mxu0 %v1153
      %1218 = vmatprep.subr.bf16.mxu0 %v1152
      %1219 = vmatpush2.bf16.msra.mxu0 %v1151
      %1220 = vmatprep.subr.bf16.mxu0 %v1150
      %1221 = vmatpush2.bf16.msra.mxu0 %v1149
      %1222 = vmatprep.subr.bf16.mxu0 %v1148
      %1223 = vmatpush2.bf16.msra.mxu0 %v1147
      %1224 = vmatprep.subr.bf16.mxu0 %v1146
      %1225 = vmatpush2.bf16.msra.mxu0 %v1145
      %1226 = vmatprep.mubr.bf16.mxu0 %v1185
      %1227 = vmatmul.mubr.bf16.gmra.mxu0 %v1045
      %v1228 = vpop.f32.mrf.mxu0
      %v1229 = vadd.f32 %v1040, %v1228
      %v1230 = vpop.f32.mrf.mxu0
      %v1231 = vadd.f32 %v1040, %v1230
      %v1232 = vpop.f32.mrf.mxu0
      %v1233 = vpop.f32.mrf.mxu0
      %1234 = vdwg.mxu0
      %v1235 = vmax.f32 %v1229, 0.0
      %v1236 = vmax.f32 %v1231, 0.0
      %1237 = vrot.lane.b32.xlu0 %v1235, 73
      %v1238 = vpop.permute.xlu0 %1237
      %1239 = vrot.lane.b32.xlu0 %v1236, 73
      %v1240 = vpop.permute.xlu0 %1239
      %v1241 = vsel %vm261, %v1238, %v1240
      %v1242 = vsel %vm261, %v1240, %v1238
      %v1243 = vld [vmem:[%s0] ss:$8 sm:$0x3]
      %v1245 = vlaneseq
      %v1246 = vshrl.u32 %v1245, 7
      %v1247 = vsub.s32 0, %v1246
      %v1248 = vrot.slane %v1243, %v1247
      %v1249 = vlaneseq
      %v1250 = vshrl.u32 %v1249, 7
      %v1251 = vsub.s32 1, %v1250
      %v1252 = vrot.slane %v1243, %v1251
      %v1255 = vmul.f32 %v1242, %v1248
      %v1256 = vmul.f32 %v1241, %v1252
      %v1257 = vpack.c.bf16 %v1255, %v1255
      %v1258 = vpack.c.bf16 %v1256, %v1256
      %v1261 = vunpack.c.l.b16 %v1257
      %v1262 = vunpack.c.l.b16 %v1258
      %v1263 = vpack.c.b16 %v1262, %v1261
      %1265 = vst [vmem:[#allocation2] sm:$0xff] %v1263
      %1266 = vrot.lane.b32.xlu0 %v1235, 72
      %v1267 = vpop.permute.xlu0 %1266
      %1268 = vrot.lane.b32.xlu0 %v1236, 72
      %v1269 = vpop.permute.xlu0 %1268
      %v1270 = vsel %vm291, %v1267, %v1269
      %v1271 = vsel %vm291, %v1269, %v1267
      %v1272 = vld [vmem:[%s294] ss:$8 sm:$0x3]
      %v1274 = vlaneseq
      %v1275 = vshrl.u32 %v1274, 7
      %v1276 = vsub.s32 0, %v1275
      %v1277 = vrot.slane %v1272, %v1276
      %v1278 = vlaneseq
      %v1279 = vshrl.u32 %v1278, 7
      %v1280 = vsub.s32 1, %v1279
      %v1281 = vrot.slane %v1272, %v1280
      %v1284 = vmul.f32 %v1271, %v1277
      %v1285 = vmul.f32 %v1270, %v1281
      %v1286 = vpack.c.bf16 %v1284, %v1284
      %v1287 = vpack.c.bf16 %v1285, %v1285
      %v1290 = vunpack.c.l.b16 %v1286
      %v1291 = vunpack.c.l.b16 %v1287
      %v1292 = vpack.c.b16 %v1291, %v1290
      %1294 = vst [vmem:[#allocation2 + $0x8] sm:$0xff] %v1292
      %1295 = vrot.lane.b32.xlu0 %v1235, 71
      %v1296 = vpop.permute.xlu0 %1295
      %1297 = vrot.lane.b32.xlu0 %v1236, 71
      %v1298 = vpop.permute.xlu0 %1297
      %v1299 = vsel %vm322, %v1296, %v1298
      %v1300 = vsel %vm322, %v1298, %v1296
      %v1301 = vld [vmem:[%s325] ss:$8 sm:$0x3]
      %v1303 = vlaneseq
      %v1304 = vshrl.u32 %v1303, 7
      %v1305 = vsub.s32 0, %v1304
      %v1306 = vrot.slane %v1301, %v1305
      %v1307 = vlaneseq
      %v1308 = vshrl.u32 %v1307, 7
      %v1309 = vsub.s32 1, %v1308
      %v1310 = vrot.slane %v1301, %v1309
      %v1313 = vmul.f32 %v1300, %v1306
      %v1314 = vmul.f32 %v1299, %v1310
      %v1315 = vpack.c.bf16 %v1313, %v1313
      %v1316 = vpack.c.bf16 %v1314, %v1314
      %v1319 = vunpack.c.l.b16 %v1315
      %v1320 = vunpack.c.l.b16 %v1316
      %v1321 = vpack.c.b16 %v1320, %v1319
      %1323 = vst [vmem:[#allocation2 + $0x10] sm:$0xff] %v1321
      %1324 = vrot.lane.b32.xlu0 %v1235, 65
      %v1325 = vpop.permute.xlu0 %1324
      %1326 = vrot.lane.b32.xlu0 %v1236, 65
      %v1327 = vpop.permute.xlu0 %1326
      %v1328 = vsel %vm353, %v1325, %v1327
      %v1329 = vsel %vm353, %v1327, %v1325
      %v1330 = vld [vmem:[%s356] ss:$8 sm:$0x3]
      %v1332 = vlaneseq
      %v1333 = vshrl.u32 %v1332, 7
      %v1334 = vsub.s32 0, %v1333
      %v1335 = vrot.slane %v1330, %v1334
      %v1336 = vlaneseq
      %v1337 = vshrl.u32 %v1336, 7
      %v1338 = vsub.s32 1, %v1337
      %v1339 = vrot.slane %v1330, %v1338
      %v1342 = vmul.f32 %v1329, %v1335
      %v1343 = vmul.f32 %v1328, %v1339
      %v1344 = vpack.c.bf16 %v1342, %v1342
      %v1345 = vpack.c.bf16 %v1343, %v1343
      %v1348 = vunpack.c.l.b16 %v1344
      %v1349 = vunpack.c.l.b16 %v1345
      %v1350 = vpack.c.b16 %v1349, %v1348
      %1352 = vst [vmem:[#allocation2 + $0x18] sm:$0xff] %v1350
      %1353 = vrot.lane.b32.xlu0 %v1235, 64
      %v1354 = vpop.permute.xlu0 %1353
      %1355 = vrot.lane.b32.xlu0 %v1236, 64
      %v1356 = vpop.permute.xlu0 %1355
      %v1357 = vsel %vm384, %v1354, %v1356
      %v1358 = vsel %vm384, %v1356, %v1354
      %v1359 = vld [vmem:[%s387] ss:$8 sm:$0x3]
      %v1361 = vlaneseq
      %v1362 = vshrl.u32 %v1361, 7
      %v1363 = vsub.s32 0, %v1362
      %v1364 = vrot.slane %v1359, %v1363
      %v1365 = vlaneseq
      %v1366 = vshrl.u32 %v1365, 7
      %v1367 = vsub.s32 1, %v1366
      %v1368 = vrot.slane %v1359, %v1367
      %v1371 = vmul.f32 %v1358, %v1364
      %v1372 = vmul.f32 %v1357, %v1368
      %v1373 = vpack.c.bf16 %v1371, %v1371
      %v1374 = vpack.c.bf16 %v1372, %v1372
      %v1377 = vunpack.c.l.b16 %v1373
      %v1378 = vunpack.c.l.b16 %v1374
      %v1379 = vpack.c.b16 %v1378, %v1377
      %1381 = vst [vmem:[#allocation2 + $0x20] sm:$0xff] %v1379
      %1382 = vrot.lane.b32.xlu0 %v1235, 63
      %v1383 = vpop.permute.xlu0 %1382
      %1384 = vrot.lane.b32.xlu0 %v1236, 63
      %v1385 = vpop.permute.xlu0 %1384
      %v1386 = vsel %vm415, %v1383, %v1385
      %v1387 = vsel %vm415, %v1385, %v1383
      %v1388 = vld [vmem:[%s418] ss:$8 sm:$0x3]
      %v1390 = vlaneseq
      %v1391 = vshrl.u32 %v1390, 7
      %v1392 = vsub.s32 0, %v1391
      %v1393 = vrot.slane %v1388, %v1392
      %v1394 = vlaneseq
      %v1395 = vshrl.u32 %v1394, 7
      %v1396 = vsub.s32 1, %v1395
      %v1397 = vrot.slane %v1388, %v1396
      %v1400 = vmul.f32 %v1387, %v1393
      %v1401 = vmul.f32 %v1386, %v1397
      %v1402 = vpack.c.bf16 %v1400, %v1400
      %v1403 = vpack.c.bf16 %v1401, %v1401
      %v1406 = vunpack.c.l.b16 %v1402
      %v1407 = vunpack.c.l.b16 %v1403
      %v1408 = vpack.c.b16 %v1407, %v1406
      %1410 = vst [vmem:[#allocation2 + $0x28] sm:$0xff] %v1408
      %1411 = vrot.lane.b32.xlu0 %v1235, 57
      %v1412 = vpop.permute.xlu0 %1411
      %1413 = vrot.lane.b32.xlu0 %v1236, 57
      %v1414 = vpop.permute.xlu0 %1413
      %v1415 = vsel %vm446, %v1412, %v1414
      %v1416 = vsel %vm446, %v1414, %v1412
      %v1417 = vld [vmem:[%s449] ss:$8 sm:$0x3]
      %v1419 = vlaneseq
      %v1420 = vshrl.u32 %v1419, 7
      %v1421 = vsub.s32 0, %v1420
      %v1422 = vrot.slane %v1417, %v1421
      %v1423 = vlaneseq
      %v1424 = vshrl.u32 %v1423, 7
      %v1425 = vsub.s32 1, %v1424
      %v1426 = vrot.slane %v1417, %v1425
      %v1429 = vmul.f32 %v1416, %v1422
      %v1430 = vmul.f32 %v1415, %v1426
      %v1431 = vpack.c.bf16 %v1429, %v1429
      %v1432 = vpack.c.bf16 %v1430, %v1430
      %v1435 = vunpack.c.l.b16 %v1431
      %v1436 = vunpack.c.l.b16 %v1432
      %v1437 = vpack.c.b16 %v1436, %v1435
      %1439 = vst [vmem:[#allocation2 + $0x30] sm:$0xff] %v1437
      %1440 = vrot.lane.b32.xlu0 %v1235, 56
      %v1441 = vpop.permute.xlu0 %1440
      %1442 = vrot.lane.b32.xlu0 %v1236, 56
      %v1443 = vpop.permute.xlu0 %1442
      %v1444 = vsel %vm477, %v1441, %v1443
      %v1445 = vsel %vm477, %v1443, %v1441
      %v1446 = vld [vmem:[%s480] ss:$8 sm:$0x3]
      %v1448 = vlaneseq
      %v1449 = vshrl.u32 %v1448, 7
      %v1450 = vsub.s32 0, %v1449
      %v1451 = vrot.slane %v1446, %v1450
      %v1452 = vlaneseq
      %v1453 = vshrl.u32 %v1452, 7
      %v1454 = vsub.s32 1, %v1453
      %v1455 = vrot.slane %v1446, %v1454
      %v1458 = vmul.f32 %v1445, %v1451
      %v1459 = vmul.f32 %v1444, %v1455
      %v1460 = vpack.c.bf16 %v1458, %v1458
      %v1461 = vpack.c.bf16 %v1459, %v1459
      %v1464 = vunpack.c.l.b16 %v1460
      %v1465 = vunpack.c.l.b16 %v1461
      %v1466 = vpack.c.b16 %v1465, %v1464
      %1468 = vst [vmem:[#allocation2 + $0x38] sm:$0xff] %v1466
      %1469 = vrot.lane.b32.xlu0 %v1235, 55
      %v1470 = vpop.permute.xlu0 %1469
      %1471 = vrot.lane.b32.xlu0 %v1236, 55
      %v1472 = vpop.permute.xlu0 %1471
      %v1473 = vsel %vm508, %v1470, %v1472
      %v1474 = vsel %vm508, %v1472, %v1470
      %v1475 = vld [vmem:[%s511] ss:$8 sm:$0x3]
      %v1477 = vlaneseq
      %v1478 = vshrl.u32 %v1477, 7
      %v1479 = vsub.s32 0, %v1478
      %v1480 = vrot.slane %v1475, %v1479
      %v1481 = vlaneseq
      %v1482 = vshrl.u32 %v1481, 7
      %v1483 = vsub.s32 1, %v1482
      %v1484 = vrot.slane %v1475, %v1483
      %v1487 = vmul.f32 %v1474, %v1480
      %v1488 = vmul.f32 %v1473, %v1484
      %v1489 = vpack.c.bf16 %v1487, %v1487
      %v1490 = vpack.c.bf16 %v1488, %v1488
      %v1493 = vunpack.c.l.b16 %v1489
      %v1494 = vunpack.c.l.b16 %v1490
      %v1495 = vpack.c.b16 %v1494, %v1493
      %1497 = vst [vmem:[#allocation2 + $0x40] sm:$0xff] %v1495
      %1498 = vrot.lane.b32.xlu0 %v1235, 9
      %v1499 = vpop.permute.xlu0 %1498
      %1500 = vrot.lane.b32.xlu0 %v1236, 9
      %v1501 = vpop.permute.xlu0 %1500
      %v1502 = vsel %vm539, %v1499, %v1501
      %v1503 = vsel %vm539, %v1501, %v1499
      %v1504 = vld [vmem:[%s542] ss:$8 sm:$0x3]
      %v1506 = vlaneseq
      %v1507 = vshrl.u32 %v1506, 7
      %v1508 = vsub.s32 0, %v1507
      %v1509 = vrot.slane %v1504, %v1508
      %v1510 = vlaneseq
      %v1511 = vshrl.u32 %v1510, 7
      %v1512 = vsub.s32 1, %v1511
      %v1513 = vrot.slane %v1504, %v1512
      %v1516 = vmul.f32 %v1503, %v1509
      %v1517 = vmul.f32 %v1502, %v1513
      %v1518 = vpack.c.bf16 %v1516, %v1516
      %v1519 = vpack.c.bf16 %v1517, %v1517
      %v1522 = vunpack.c.l.b16 %v1518
      %v1523 = vunpack.c.l.b16 %v1519
      %v1524 = vpack.c.b16 %v1523, %v1522
      %1526 = vst [vmem:[#allocation2 + $0x48] sm:$0xff] %v1524
      %1527 = vrot.lane.b32.xlu0 %v1235, 8
      %v1528 = vpop.permute.xlu0 %1527
      %1529 = vrot.lane.b32.xlu0 %v1236, 8
      %v1530 = vpop.permute.xlu0 %1529
      %v1531 = vsel %vm570, %v1528, %v1530
      %v1532 = vsel %vm570, %v1530, %v1528
      %v1533 = vld [vmem:[%s573] ss:$8 sm:$0x3]
      %v1535 = vlaneseq
      %v1536 = vshrl.u32 %v1535, 7
      %v1537 = vsub.s32 0, %v1536
      %v1538 = vrot.slane %v1533, %v1537
      %v1539 = vlaneseq
      %v1540 = vshrl.u32 %v1539, 7
      %v1541 = vsub.s32 1, %v1540
      %v1542 = vrot.slane %v1533, %v1541
      %v1545 = vmul.f32 %v1532, %v1538
      %v1546 = vmul.f32 %v1531, %v1542
      %v1547 = vpack.c.bf16 %v1545, %v1545
      %v1548 = vpack.c.bf16 %v1546, %v1546
      %v1551 = vunpack.c.l.b16 %v1547
      %v1552 = vunpack.c.l.b16 %v1548
      %v1553 = vpack.c.b16 %v1552, %v1551
      %1555 = vst [vmem:[#allocation2 + $0x50] sm:$0xff] %v1553
      %1556 = vrot.lane.b32.xlu0 %v1235, 7
      %v1557 = vpop.permute.xlu0 %1556
      %1558 = vrot.lane.b32.xlu0 %v1236, 7
      %v1559 = vpop.permute.xlu0 %1558
      %v1560 = vsel %vm601, %v1557, %v1559
      %v1561 = vsel %vm601, %v1559, %v1557
      %v1562 = vld [vmem:[%s604] ss:$8 sm:$0x3]
      %v1564 = vlaneseq
      %v1565 = vshrl.u32 %v1564, 7
      %v1566 = vsub.s32 0, %v1565
      %v1567 = vrot.slane %v1562, %v1566
      %v1568 = vlaneseq
      %v1569 = vshrl.u32 %v1568, 7
      %v1570 = vsub.s32 1, %v1569
      %v1571 = vrot.slane %v1562, %v1570
      %v1574 = vmul.f32 %v1561, %v1567
      %v1575 = vmul.f32 %v1560, %v1571
      %v1576 = vpack.c.bf16 %v1574, %v1574
      %v1577 = vpack.c.bf16 %v1575, %v1575
      %v1580 = vunpack.c.l.b16 %v1576
      %v1581 = vunpack.c.l.b16 %v1577
      %v1582 = vpack.c.b16 %v1581, %v1580
      %1584 = vst [vmem:[#allocation2 + $0x58] sm:$0xff] %v1582
      %1585 = vrot.lane.b32.xlu0 %v1235, 1
      %v1586 = vpop.permute.xlu0 %1585
      %1587 = vrot.lane.b32.xlu0 %v1236, 1
      %v1588 = vpop.permute.xlu0 %1587
      %v1589 = vsel %vm632, %v1586, %v1588
      %v1590 = vsel %vm632, %v1588, %v1586
      %v1591 = vld [vmem:[%s635] ss:$8 sm:$0x3]
      %v1593 = vlaneseq
      %v1594 = vshrl.u32 %v1593, 7
      %v1595 = vsub.s32 0, %v1594
      %v1596 = vrot.slane %v1591, %v1595
      %v1597 = vlaneseq
      %v1598 = vshrl.u32 %v1597, 7
      %v1599 = vsub.s32 1, %v1598
      %v1600 = vrot.slane %v1591, %v1599
      %v1603 = vmul.f32 %v1590, %v1596
      %v1604 = vmul.f32 %v1589, %v1600
      %v1605 = vpack.c.bf16 %v1603, %v1603
      %v1606 = vpack.c.bf16 %v1604, %v1604
      %v1609 = vunpack.c.l.b16 %v1605
      %v1610 = vunpack.c.l.b16 %v1606
      %v1611 = vpack.c.b16 %v1610, %v1609
      %1613 = vst [vmem:[#allocation2 + $0x60] sm:$0xff] %v1611
      %v1614 = vpack.c.bf16 %v1235, %v1235
      %v1615 = vpack.c.bf16 %v1236, %v1236
      %v1618 = vunpack.c.l.b16 %v1614
      %v1619 = vunpack.c.l.b16 %v1615
      %v1620 = vpack.c.b16 %v1619, %v1618
      %1622 = vst [vmem:[#allocation2 + $0x68] sm:$0xff] %v1620
      %1623 = vrot.lane.b32.xlu0 %v1235, 127
      %v1624 = vpop.permute.xlu0 %1623
      %1625 = vrot.lane.b32.xlu0 %v1236, 127
      %v1626 = vpop.permute.xlu0 %1625
      %v1627 = vsel %vm672, %v1624, %v1626
      %v1628 = vsel %vm672, %v1626, %v1624
      %v1629 = vld [vmem:[%s675] ss:$8 sm:$0x3]
      %v1631 = vlaneseq
      %v1632 = vshrl.u32 %v1631, 7
      %v1633 = vsub.s32 0, %v1632
      %v1634 = vrot.slane %v1629, %v1633
      %v1635 = vlaneseq
      %v1636 = vshrl.u32 %v1635, 7
      %v1637 = vsub.s32 1, %v1636
      %v1638 = vrot.slane %v1629, %v1637
      %v1641 = vmul.f32 %v1627, %v1634
      %v1642 = vmul.f32 %v1628, %v1638
      %v1643 = vpack.c.bf16 %v1641, %v1641
      %v1644 = vpack.c.bf16 %v1642, %v1642
      %v1647 = vunpack.c.l.b16 %v1643
      %v1648 = vunpack.c.l.b16 %v1644
      %v1649 = vpack.c.b16 %v1648, %v1647
      %1651 = vst [vmem:[#allocation2 + $0x70] sm:$0xff] %v1649
      %1652 = vrot.lane.b32.xlu0 %v1235, 121
      %v1653 = vpop.permute.xlu0 %1652
      %1654 = vrot.lane.b32.xlu0 %v1236, 121
      %v1655 = vpop.permute.xlu0 %1654
      %v1656 = vsel %vm703, %v1653, %v1655
      %v1657 = vsel %vm703, %v1655, %v1653
      %v1658 = vld [vmem:[%s706] ss:$8 sm:$0x3]
      %v1660 = vlaneseq
      %v1661 = vshrl.u32 %v1660, 7
      %v1662 = vsub.s32 0, %v1661
      %v1663 = vrot.slane %v1658, %v1662
      %v1664 = vlaneseq
      %v1665 = vshrl.u32 %v1664, 7
      %v1666 = vsub.s32 1, %v1665
      %v1667 = vrot.slane %v1658, %v1666
      %v1670 = vmul.f32 %v1656, %v1663
      %v1671 = vmul.f32 %v1657, %v1667
      %v1672 = vpack.c.bf16 %v1670, %v1670
      %v1673 = vpack.c.bf16 %v1671, %v1671
      %v1676 = vunpack.c.l.b16 %v1672
      %v1677 = vunpack.c.l.b16 %v1673
      %v1678 = vpack.c.b16 %v1677, %v1676
      %1680 = vst [vmem:[#allocation2 + $0x78] sm:$0xff] %v1678
      %1681 = vrot.lane.b32.xlu0 %v1235, 120
      %v1682 = vpop.permute.xlu0 %1681
      %1683 = vrot.lane.b32.xlu0 %v1236, 120
      %v1684 = vpop.permute.xlu0 %1683
      %v1685 = vsel %vm734, %v1682, %v1684
      %v1686 = vsel %vm734, %v1684, %v1682
      %v1687 = vld [vmem:[%s737] ss:$8 sm:$0x3]
      %v1689 = vlaneseq
      %v1690 = vshrl.u32 %v1689, 7
      %v1691 = vsub.s32 0, %v1690
      %v1692 = vrot.slane %v1687, %v1691
      %v1693 = vlaneseq
      %v1694 = vshrl.u32 %v1693, 7
      %v1695 = vsub.s32 1, %v1694
      %v1696 = vrot.slane %v1687, %v1695
      %v1699 = vmul.f32 %v1685, %v1692
      %v1700 = vmul.f32 %v1686, %v1696
      %v1701 = vpack.c.bf16 %v1699, %v1699
      %v1702 = vpack.c.bf16 %v1700, %v1700
      %v1705 = vunpack.c.l.b16 %v1701
      %v1706 = vunpack.c.l.b16 %v1702
      %v1707 = vpack.c.b16 %v1706, %v1705
      %1709 = vst [vmem:[#allocation2 + $0x80] sm:$0xff] %v1707
      %1710 = vrot.lane.b32.xlu0 %v1235, 119
      %v1711 = vpop.permute.xlu0 %1710
      %1712 = vrot.lane.b32.xlu0 %v1236, 119
      %v1713 = vpop.permute.xlu0 %1712
      %v1714 = vsel %vm765, %v1711, %v1713
      %v1715 = vsel %vm765, %v1713, %v1711
      %v1716 = vld [vmem:[%s768] ss:$8 sm:$0x3]
      %v1718 = vlaneseq
      %v1719 = vshrl.u32 %v1718, 7
      %v1720 = vsub.s32 0, %v1719
      %v1721 = vrot.slane %v1716, %v1720
      %v1722 = vlaneseq
      %v1723 = vshrl.u32 %v1722, 7
      %v1724 = vsub.s32 1, %v1723
      %v1725 = vrot.slane %v1716, %v1724
      %v1728 = vmul.f32 %v1714, %v1721
      %v1729 = vmul.f32 %v1715, %v1725
      %v1730 = vpack.c.bf16 %v1728, %v1728
      %v1731 = vpack.c.bf16 %v1729, %v1729
      %v1734 = vunpack.c.l.b16 %v1730
      %v1735 = vunpack.c.l.b16 %v1731
      %v1736 = vpack.c.b16 %v1735, %v1734
      %1738 = vst [vmem:[#allocation2 + $0x88] sm:$0xff] %v1736
      %v1739 = vld [vmem:[%s792] ss:$8 sm:$0x3]
      %v1741 = vlaneseq
      %v1742 = vshrl.u32 %v1741, 7
      %v1743 = vsub.s32 0, %v1742
      %v1744 = vrot.slane %v1739, %v1743
      %v1745 = vlaneseq
      %v1746 = vshrl.u32 %v1745, 7
      %v1747 = vsub.s32 1, %v1746
      %v1748 = vrot.slane %v1739, %v1747
      %v1751 = vmul.f32 %v1241, %v1744
      %v1752 = vmul.f32 %v1242, %v1748
      %v1753 = vpack.c.bf16 %v1751, %v1751
      %v1754 = vpack.c.bf16 %v1752, %v1752
      %v1757 = vunpack.c.l.b16 %v1753
      %v1758 = vunpack.c.l.b16 %v1754
      %v1759 = vpack.c.b16 %v1758, %v1757
      %1761 = vst [vmem:[#allocation2 + $0x90] sm:$0xff] %v1759
      %v1762 = vld [vmem:[%s816] ss:$8 sm:$0x3]
      %v1764 = vlaneseq
      %v1765 = vshrl.u32 %v1764, 7
      %v1766 = vsub.s32 0, %v1765
      %v1767 = vrot.slane %v1762, %v1766
      %v1768 = vlaneseq
      %v1769 = vshrl.u32 %v1768, 7
      %v1770 = vsub.s32 1, %v1769
      %v1771 = vrot.slane %v1762, %v1770
      %v1774 = vmul.f32 %v1270, %v1767
      %v1775 = vmul.f32 %v1271, %v1771
      %v1776 = vpack.c.bf16 %v1774, %v1774
      %v1777 = vpack.c.bf16 %v1775, %v1775
      %v1780 = vunpack.c.l.b16 %v1776
      %v1781 = vunpack.c.l.b16 %v1777
      %v1782 = vpack.c.b16 %v1781, %v1780
      %1784 = vst [vmem:[#allocation2 + $0x98] sm:$0xff] %v1782
      %v1785 = vld [vmem:[%s840] ss:$8 sm:$0x3]
      %v1787 = vlaneseq
      %v1788 = vshrl.u32 %v1787, 7
      %v1789 = vsub.s32 0, %v1788
      %v1790 = vrot.slane %v1785, %v1789
      %v1791 = vlaneseq
      %v1792 = vshrl.u32 %v1791, 7
      %v1793 = vsub.s32 1, %v1792
      %v1794 = vrot.slane %v1785, %v1793
      %v1797 = vmul.f32 %v1299, %v1790
      %v1798 = vmul.f32 %v1300, %v1794
      %v1799 = vpack.c.bf16 %v1797, %v1797
      %v1800 = vpack.c.bf16 %v1798, %v1798
      %v1803 = vunpack.c.l.b16 %v1799
      %v1804 = vunpack.c.l.b16 %v1800
      %v1805 = vpack.c.b16 %v1804, %v1803
      %1807 = vst [vmem:[#allocation2 + $0xa0] sm:$0xff] %v1805
      %v1808 = vld [vmem:[%s864] ss:$8 sm:$0x3]
      %v1810 = vlaneseq
      %v1811 = vshrl.u32 %v1810, 7
      %v1812 = vsub.s32 0, %v1811
      %v1813 = vrot.slane %v1808, %v1812
      %v1814 = vlaneseq
      %v1815 = vshrl.u32 %v1814, 7
      %v1816 = vsub.s32 1, %v1815
      %v1817 = vrot.slane %v1808, %v1816
      %v1820 = vmul.f32 %v1328, %v1813
      %v1821 = vmul.f32 %v1329, %v1817
      %v1822 = vpack.c.bf16 %v1820, %v1820
      %v1823 = vpack.c.bf16 %v1821, %v1821
      %v1826 = vunpack.c.l.b16 %v1822
      %v1827 = vunpack.c.l.b16 %v1823
      %v1828 = vpack.c.b16 %v1827, %v1826
      %1830 = vst [vmem:[#allocation2 + $0xa8] sm:$0xff] %v1828
      %v1831 = vld [vmem:[%s888] ss:$8 sm:$0x3]
      %v1833 = vlaneseq
      %v1834 = vshrl.u32 %v1833, 7
      %v1835 = vsub.s32 0, %v1834
      %v1836 = vrot.slane %v1831, %v1835
      %v1837 = vlaneseq
      %v1838 = vshrl.u32 %v1837, 7
      %v1839 = vsub.s32 1, %v1838
      %v1840 = vrot.slane %v1831, %v1839
      %v1843 = vmul.f32 %v1357, %v1836
      %v1844 = vmul.f32 %v1358, %v1840
      %v1845 = vpack.c.bf16 %v1843, %v1843
      %v1846 = vpack.c.bf16 %v1844, %v1844
      %v1849 = vunpack.c.l.b16 %v1845
      %v1850 = vunpack.c.l.b16 %v1846
      %v1851 = vpack.c.b16 %v1850, %v1849
      %1853 = vst [vmem:[#allocation2 + $0xb0] sm:$0xff] %v1851
      %v1854 = vld [vmem:[%s912] ss:$8 sm:$0x3]
      %v1856 = vlaneseq
      %v1857 = vshrl.u32 %v1856, 7
      %v1858 = vsub.s32 0, %v1857
      %v1859 = vrot.slane %v1854, %v1858
      %v1860 = vlaneseq
      %v1861 = vshrl.u32 %v1860, 7
      %v1862 = vsub.s32 1, %v1861
      %v1863 = vrot.slane %v1854, %v1862
      %v1866 = vmul.f32 %v1386, %v1859
      %v1867 = vmul.f32 %v1387, %v1863
      %v1868 = vpack.c.bf16 %v1866, %v1866
      %v1869 = vpack.c.bf16 %v1867, %v1867
      %v1872 = vunpack.c.l.b16 %v1868
      %v1873 = vunpack.c.l.b16 %v1869
      %v1874 = vpack.c.b16 %v1873, %v1872
      %1876 = vst [vmem:[#allocation2 + $0xb8] sm:$0xff] %v1874
      %v1877 = vld [vmem:[%s936] ss:$8 sm:$0x3]
      %v1879 = vlaneseq
      %v1880 = vshrl.u32 %v1879, 7
      %v1881 = vsub.s32 0, %v1880
      %v1882 = vrot.slane %v1877, %v1881
      %v1883 = vlaneseq
      %v1884 = vshrl.u32 %v1883, 7
      %v1885 = vsub.s32 1, %v1884
      %v1886 = vrot.slane %v1877, %v1885
      %v1889 = vmul.f32 %v1415, %v1882
      %v1890 = vmul.f32 %v1416, %v1886
      %v1891 = vpack.c.bf16 %v1889, %v1889
      %v1892 = vpack.c.bf16 %v1890, %v1890
      %v1895 = vunpack.c.l.b16 %v1891
      %v1896 = vunpack.c.l.b16 %v1892
      %v1897 = vpack.c.b16 %v1896, %v1895
      %1899 = vst [vmem:[#allocation2 + $0xc0] sm:$0xff] %v1897
      %v1900 = vld [vmem:[%s960] ss:$8 sm:$0x3]
      %v1902 = vlaneseq
      %v1903 = vshrl.u32 %v1902, 7
      %v1904 = vsub.s32 0, %v1903
      %v1905 = vrot.slane %v1900, %v1904
      %v1906 = vlaneseq
      %v1907 = vshrl.u32 %v1906, 7
      %v1908 = vsub.s32 1, %v1907
      %v1909 = vrot.slane %v1900, %v1908
      %v1912 = vmul.f32 %v1444, %v1905
      %v1913 = vmul.f32 %v1445, %v1909
      %v1914 = vpack.c.bf16 %v1912, %v1912
      %v1915 = vpack.c.bf16 %v1913, %v1913
      %v1918 = vunpack.c.l.b16 %v1914
      %v1919 = vunpack.c.l.b16 %v1915
      %v1920 = vpack.c.b16 %v1919, %v1918
      %1922 = vst [vmem:[#allocation2 + $0xc8] sm:$0xff] %v1920
      %v1923 = vld [vmem:[%s984] ss:$8 sm:$0x3]
      %v1925 = vlaneseq
      %v1926 = vshrl.u32 %v1925, 7
      %v1927 = vsub.s32 0, %v1926
      %v1928 = vrot.slane %v1923, %v1927
      %v1929 = vlaneseq
      %v1930 = vshrl.u32 %v1929, 7
      %v1931 = vsub.s32 1, %v1930
      %v1932 = vrot.slane %v1923, %v1931
      %v1935 = vmul.f32 %v1473, %v1928
      %v1936 = vmul.f32 %v1474, %v1932
      %v1937 = vpack.c.bf16 %v1935, %v1935
      %v1938 = vpack.c.bf16 %v1936, %v1936
      %v1941 = vunpack.c.l.b16 %v1937
      %v1942 = vunpack.c.l.b16 %v1938
      %v1943 = vpack.c.b16 %v1942, %v1941
      %1945 = vst [vmem:[#allocation2 + $0xd0] sm:$0xff] %v1943
      %v1946 = vld [vmem:[%s4] sm:$0xff]
      %v1947 = vld [vmem:[#allocation2] sm:$0xff]
      %v1948 = vld [vmem:[#allocation2 + $0x8] sm:$0xff]
      %v1949 = vld [vmem:[#allocation2 + $0x10] sm:$0xff]
      %v1950 = vld [vmem:[#allocation2 + $0x18] sm:$0xff]
      %v1951 = vld [vmem:[#allocation2 + $0x20] sm:$0xff]
      %v1952 = vld [vmem:[#allocation2 + $0x28] sm:$0xff]
      %v1953 = vld [vmem:[#allocation2 + $0x30] sm:$0xff]
      %v1954 = vld [vmem:[#allocation2 + $0x38] sm:$0xff]
      %v1955 = vld [vmem:[#allocation2 + $0x40] sm:$0xff]
      %v1956 = vld [vmem:[#allocation2 + $0x48] sm:$0xff]
      %v1957 = vld [vmem:[#allocation2 + $0x50] sm:$0xff]
      %v1958 = vld [vmem:[#allocation2 + $0x58] sm:$0xff]
      %v1959 = vld [vmem:[#allocation2 + $0x60] sm:$0xff]
      %v1960 = vld [vmem:[#allocation2 + $0x68] sm:$0xff]
      %v1961 = vld [vmem:[#allocation2 + $0x70] sm:$0xff]
      %v1962 = vld [vmem:[#allocation2 + $0x78] sm:$0xff]
      %v1963 = vld [vmem:[#allocation2 + $0x80] sm:$0xff]
      %v1964 = vld [vmem:[#allocation2 + $0x88] sm:$0xff]
      %v1965 = vld [vmem:[#allocation2 + $0x90] sm:$0xff]
      %v1966 = vld [vmem:[#allocation2 + $0x98] sm:$0xff]
      %v1967 = vld [vmem:[#allocation2 + $0xa0] sm:$0xff]
      %v1968 = vld [vmem:[#allocation2 + $0xa8] sm:$0xff]
      %v1969 = vld [vmem:[#allocation2 + $0xb0] sm:$0xff]
      %v1970 = vld [vmem:[#allocation2 + $0xb8] sm:$0xff]
      %v1971 = vld [vmem:[#allocation2 + $0xc0] sm:$0xff]
      %v1972 = vld [vmem:[#allocation2 + $0xc8] sm:$0xff]
      %v1973 = vld [vmem:[#allocation2 + $0xd0] sm:$0xff]
      %v1974 = vld [vmem:[%s5] sm:$0xff]
      %1976 = vset.pattern.permute.xlu0 0
      %1977 = vperm.xlu0 %1976, %v1974
      %v1978 = vpop.permute.xlu0 %1977
      %v1981 = vunpack.c.l.b16 %v1946
      %v1982 = vunpack.c.h.b16 %v1946
      %v1983 = vpack.c.b16 %v1981, %v1981
      %v1984 = vpack.c.b16 %v1982, %v1982
      %v2013 = vunpack.c.l.b16 %v1947
      %v2014 = vunpack.c.h.b16 %v1947
      %v2015 = vunpack.c.l.b16 %v1948
      %v2016 = vunpack.c.h.b16 %v1948
      %v2017 = vunpack.c.l.b16 %v1949
      %v2018 = vunpack.c.h.b16 %v1949
      %v2019 = vunpack.c.l.b16 %v1950
      %v2020 = vunpack.c.h.b16 %v1950
      %v2021 = vunpack.c.l.b16 %v1951
      %v2022 = vunpack.c.h.b16 %v1951
      %v2023 = vunpack.c.l.b16 %v1952
      %v2024 = vunpack.c.h.b16 %v1952
      %v2025 = vunpack.c.l.b16 %v1953
      %v2026 = vunpack.c.h.b16 %v1953
      %v2027 = vunpack.c.l.b16 %v1954
      %v2028 = vunpack.c.h.b16 %v1954
      %v2029 = vunpack.c.l.b16 %v1955
      %v2030 = vunpack.c.h.b16 %v1955
      %v2031 = vunpack.c.l.b16 %v1956
      %v2032 = vunpack.c.h.b16 %v1956
      %v2033 = vunpack.c.l.b16 %v1957
      %v2034 = vunpack.c.h.b16 %v1957
      %v2035 = vunpack.c.l.b16 %v1958
      %v2036 = vunpack.c.h.b16 %v1958
      %v2037 = vunpack.c.l.b16 %v1959
      %v2038 = vunpack.c.h.b16 %v1959
      %v2039 = vunpack.c.l.b16 %v1960
      %v2040 = vunpack.c.h.b16 %v1960
      %v2041 = vunpack.c.l.b16 %v1961
      %v2042 = vunpack.c.h.b16 %v1961
      %v2043 = vunpack.c.l.b16 %v1962
      %v2044 = vunpack.c.h.b16 %v1962
      %v2045 = vunpack.c.l.b16 %v1963
      %v2046 = vunpack.c.h.b16 %v1963
      %v2047 = vunpack.c.l.b16 %v1964
      %v2048 = vunpack.c.h.b16 %v1964
      %v2049 = vunpack.c.l.b16 %v1965
      %v2050 = vunpack.c.h.b16 %v1965
      %v2051 = vunpack.c.l.b16 %v1966
      %v2052 = vunpack.c.h.b16 %v1966
      %v2053 = vunpack.c.l.b16 %v1967
      %v2054 = vunpack.c.h.b16 %v1967
      %v2055 = vunpack.c.l.b16 %v1968
      %v2056 = vunpack.c.h.b16 %v1968
      %v2057 = vunpack.c.l.b16 %v1969
      %v2058 = vunpack.c.h.b16 %v1969
      %v2059 = vunpack.c.l.b16 %v1970
      %v2060 = vunpack.c.h.b16 %v1970
      %v2061 = vunpack.c.l.b16 %v1971
      %v2062 = vunpack.c.h.b16 %v1971
      %v2063 = vunpack.c.l.b16 %v1972
      %v2064 = vunpack.c.h.b16 %v1972
      %v2065 = vunpack.c.l.b16 %v1973
      %v2066 = vunpack.c.h.b16 %v1973
      %v2067 = vpack.c.b16 %v2015, %v2013
      %v2068 = vpack.c.b16 %v2016, %v2014
      %v2069 = vpack.c.b16 %v2019, %v2017
      %v2070 = vpack.c.b16 %v2020, %v2018
      %v2071 = vpack.c.b16 %v2023, %v2021
      %v2072 = vpack.c.b16 %v2024, %v2022
      %v2073 = vpack.c.b16 %v2027, %v2025
      %v2074 = vpack.c.b16 %v2028, %v2026
      %v2075 = vpack.c.b16 %v2031, %v2029
      %v2076 = vpack.c.b16 %v2032, %v2030
      %v2077 = vpack.c.b16 %v2035, %v2033
      %v2078 = vpack.c.b16 %v2036, %v2034
      %v2079 = vpack.c.b16 %v2039, %v2037
      %v2080 = vpack.c.b16 %v2040, %v2038
      %v2081 = vpack.c.b16 %v2043, %v2041
      %v2082 = vpack.c.b16 %v2044, %v2042
      %v2083 = vpack.c.b16 %v2047, %v2045
      %v2084 = vpack.c.b16 %v2048, %v2046
      %v2085 = vpack.c.b16 %v2051, %v2049
      %v2086 = vpack.c.b16 %v2052, %v2050
      %v2087 = vpack.c.b16 %v2055, %v2053
      %v2088 = vpack.c.b16 %v2056, %v2054
      %v2089 = vpack.c.b16 %v2059, %v2057
      %v2090 = vpack.c.b16 %v2060, %v2058
      %v2091 = vpack.c.b16 %v2063, %v2061
      %v2092 = vpack.c.b16 %v2064, %v2062
      %v2093 = vpack.c.b16 %v2065, %v2065
      %v2094 = vpack.c.b16 %v2066, %v2066
      %v2122 = vsel %vm1183, %v1984, 0
      %v2125 = vsel %vm1187, %v2093, 0
      %v2128 = vsel %vm1187, %v2094, 0
      %2130 = vmatprep.subr.bf16.mxu0 %v2082
      %2131 = vmatpush1.bf16.msra.mxu0 %v2081
      %2132 = vmatprep.subr.bf16.mxu0 %v2080
      %2133 = vmatpush1.bf16.msra.mxu0 %v2079
      %2134 = vmatprep.subr.bf16.mxu0 %v2078
      %2135 = vmatpush1.bf16.msra.mxu0 %v2077
      %2136 = vmatprep.subr.bf16.mxu0 %v2076
      %2137 = vmatpush1.bf16.msra.mxu0 %v2075
      %2138 = vmatprep.subr.bf16.mxu0 %v2074
      %2139 = vmatpush1.bf16.msra.mxu0 %v2073
      %2140 = vmatprep.subr.bf16.mxu0 %v2072
      %2141 = vmatpush1.bf16.msra.mxu0 %v2071
      %2142 = vmatprep.subr.bf16.mxu0 %v2070
      %2143 = vmatpush1.bf16.msra.mxu0 %v2069
      %2144 = vmatprep.subr.bf16.mxu0 %v2068
      %2145 = vmatpush1.bf16.msra.mxu0 %v2067
      %2146 = vmatprep.subr.bf16.mxu0 0
      %2147 = vmatpush2.bf16.msra.mxu0 0
      %2148 = vmatprep.subr.bf16.mxu0 0
      %2149 = vmatpush2.bf16.msra.mxu0 0
      %2150 = vmatprep.subr.bf16.mxu0 %v2128
      %2151 = vmatpush2.bf16.msra.mxu0 %v2125
      %2152 = vmatprep.subr.bf16.mxu0 %v2092
      %2153 = vmatpush2.bf16.msra.mxu0 %v2091
      %2154 = vmatprep.subr.bf16.mxu0 %v2090
      %2155 = vmatpush2.bf16.msra.mxu0 %v2089
      %2156 = vmatprep.subr.bf16.mxu0 %v2088
      %2157 = vmatpush2.bf16.msra.mxu0 %v2087
      %2158 = vmatprep.subr.bf16.mxu0 %v2086
      %2159 = vmatpush2.bf16.msra.mxu0 %v2085
      %2160 = vmatprep.subr.bf16.mxu0 %v2084
      %2161 = vmatpush2.bf16.msra.mxu0 %v2083
      %2162 = vmatprep.mubr.bf16.mxu0 %v2122
      %2163 = vmatmul.mubr.bf16.gmra.mxu0 %v1983
      %v2164 = vpop.f32.mrf.mxu0
      %v2165 = vadd.f32 %v1978, %v2164
      %v2166 = vpop.f32.mrf.mxu0
      %v2167 = vadd.f32 %v1978, %v2166
      %v2168 = vpop.f32.mrf.mxu0
      %v2169 = vpop.f32.mrf.mxu0
      %2170 = vdwg.mxu0
      %v2171 = vmul.f32 %v2165, 0.1
      %v2172 = vmul.f32 %v2167, 0.1
      %v2173 = vadd.f32 %v2171, %v253
      %v2174 = vadd.f32 %v2172, %v254
      %2175 = vst [vmem:[%s251] sm:$0xff] %v2173
      %2176 = vst [vmem:[%s251 + $0x8] sm:$0xff] %v2174
      %p2177 = scmp.lt.s32.totalorder %s17, 1
      %s2178 = scalar_select %p2177, %s17, 1
      %s2179 = smul.addr %s2178, 2
      %s2180 = smul.addr %s2179, 8
      %s2181 = scalar_lea.vmem %s6, %s2180
      // Predicated region
      $region45: #{resblock_forward.1} parent=43 // pred_check
        %p2182 = pneg %p166
      $region46: #{resblock_forward.1} parent=43 // pred_check_branch
        %2184 = sbr.rel (%p2182) target = $region48
      $region47: #{resblock_forward.1} parent=43 // pred_region
        _
      $region48: #{resblock_forward.1} parent=43 // pred_fallthru
        _
    $region44: #{resblock_forward.1} parent=5 // pred_fallthru
      _
    %p2185 = scmp.le.s32.totalorder 2, %s12
    // Predicated region
    $region49: #{resblock_forward.1} parent=5 // pred_check
      %p2186 = pneg %p2185
    $region50: #{resblock_forward.1} parent=5 // pred_check_branch
      %2188 = sbr.rel (%p2186) target = $region52
    $region51: #{resblock_forward.1} parent=5 // pred_region
      %s2189 = ssub.s32 %s12, 2
      // Predicated region
      $region53: #{resblock_forward.1} parent=51 // pred_check
        %p2190 = pneg %p172
      $region54: #{resblock_forward.1} parent=51 // pred_check_branch
        %2192 = sbr.rel (%p2190) target = $region56
      $region55: #{resblock_forward.1} parent=51 // pred_region
        %p2193 = scmp.lt.s32.totalorder %s18, 1
        %s2194 = scalar_select %p2193, %s18, 1
        %s2195 = smul.addr %s2194, 2
        %s2196 = smul.addr %s2195, 8
        %s2197 = scalar_lea.vmem %s6, %s2196
      $region56: #{resblock_forward.1} parent=51 // pred_fallthru
        _
    $region52: #{resblock_forward.1} parent=5 // pred_fallthru
      _
  $region6: #{resblock_forward.1} parent=0 // loop_footer
    %s16 = sadd.s32 1, %s12
  $region7: #{resblock_forward.1} parent=0 // loop_footer_branch
    %11 = sbr.rel target = $region3
  $region8: #{resblock_forward.1} parent=0 // loop_exit
    _

</llo_original>
